<compile_context>
chip_gen: v7x
topology: tpu7x:2x2x1
jax: 0.10.0
libtpu: 0.0.40
codegen_flags: <defaults>
</compile_context>

<pallas_src>
from functools import partial

import jax
import jax.numpy as jnp
import numpy as np
from jax.experimental import pallas as pl
from jax.experimental.pallas import tpu as pltpu

LANE = 128
_VMEM_LIMIT = 48 * 1024 * 1024  # safe on v7x (64 MiB physical) and v5e/v6e (128 MiB)


def _round_up(x, m):
    return (x + m - 1) // m * m


def _pad2(x, rows, cols):
    """Zero-pad a 2D array up to (rows, cols)."""
    return jnp.zeros((rows, cols), x.dtype).at[: x.shape[0], : x.shape[1]].set(x)


def _choose_tiles(num_nodes):
    """(tm, tk, n_pad): row/reduction tile sizes + padded node count."""
    if num_nodes <= 512:
        t = _round_up(num_nodes, LANE)
        return t, t, t
    if num_nodes <= 4096:
        return 512, 512, _round_up(num_nodes, 512)
    return 512, 1024, _round_up(num_nodes, 1024)


# ---------------------------------------------------------------------------
# Kernels
# ---------------------------------------------------------------------------
def _conv1_kernel(a_ref, xk_ref, xi_ref, dinv_ref, wn_ref, ws_ref, b_ref,
                  h_ref, acc_ref):
    """h1 row tile = relu(((A @ x) * inv_deg) @ Wn + x @ Ws + b), stored bf16."""
    k = pl.program_id(1)

    @pl.when(k == 0)
    def _():
        acc_ref[...] = jnp.zeros_like(acc_ref)

    # bf16 x bf16 -> f32 accumulate (native MXU rate, no per-step up-cast).
    acc_ref[...] += jnp.dot(a_ref[...], xk_ref[...],
                            preferred_element_type=jnp.float32)

    @pl.when(k == pl.num_programs(1) - 1)
    def _():
        # Epilogue runs once per row tile: f32 VPU math + small f32 matmuls.
        agg = acc_ref[...] * dinv_ref[...]
        h = (jnp.dot(agg, wn_ref[...], preferred_element_type=jnp.float32)
             + jnp.dot(xi_ref[...].astype(jnp.float32), ws_ref[...],
                       preferred_element_type=jnp.float32)
             + b_ref[...])
        h_ref[...] = jnp.maximum(h, 0.0).astype(h_ref.dtype)


def _conv2_pool_kernel(a_ref, hk_ref, hi_ref, dinv_ref, p_ref,
                       wn_ref, ws_ref, b_ref, part_ref, acc_ref):
    """SAGEConv2 + per-row-tile partial mean-pool contribution.

    Emits partial pooled sums per row tile (i-indexed output) so the row axis
    can be megacore-parallel; the tiny reduce + MLP head is done in JAX.
    """
    k = pl.program_id(1)

    @pl.when(k == 0)
    def _():
        acc_ref[...] = jnp.zeros_like(acc_ref)

    acc_ref[...] += jnp.dot(a_ref[...], hk_ref[...],
                            preferred_element_type=jnp.float32)

    @pl.when(k == pl.num_programs(1) - 1)
    def _():
        agg = acc_ref[...] * dinv_ref[...]
        h2 = (jnp.dot(agg, wn_ref[...], preferred_element_type=jnp.float32)
              + jnp.dot(hi_ref[...].astype(jnp.float32), ws_ref[...],
                        preferred_element_type=jnp.float32)
              + b_ref[...])
        # partial mean-pool contribution of this row tile: P[:, tile] @ h2_tile
        part_ref[0] = jnp.dot(p_ref[...], h2, preferred_element_type=jnp.float32)


# ---------------------------------------------------------------------------
# pallas_call wrappers
# ---------------------------------------------------------------------------
def _sage_conv1(a, x, dinv, wn, ws, b, *, tm, tk):
    n_pad = a.shape[0]
    fp = x.shape[1]
    hp = wn.shape[1]
    grid = (n_pad // tm, n_pad // tk)
    ni = n_pad // tm
    flops = 2 * n_pad * n_pad * fp + 4 * n_pad * fp * hp
    bytes_accessed = (n_pad * n_pad * 2          # A (bf16)
                      + ni * n_pad * fp * 2      # xk re-read per row tile (bf16)
                      + n_pad * fp * 2           # xi self-term (bf16)
                      + n_pad * 4                # 1/deg
                      + 2 * fp * hp * 4 + hp * 4
                      + n_pad * hp * 2)          # h1 write (bf16)
    return pl.pallas_call(
        _conv1_kernel,
        out_shape=jax.ShapeDtypeStruct((n_pad, hp), jnp.bfloat16),
        grid_spec=pltpu.PrefetchScalarGridSpec(
            num_scalar_prefetch=0,
            grid=grid,
            in_specs=[
                pl.BlockSpec((tm, tk), lambda i, k: (i, k)),   # A (bf16 counts)
                pl.BlockSpec((tk, fp), lambda i, k: (k, 0)),   # x rows (aggregation)
                pl.BlockSpec((tm, fp), lambda i, k: (i, 0)),   # x rows (self term)
                pl.BlockSpec((tm, 1), lambda i, k: (i, 0)),    # 1/deg
                pl.BlockSpec((fp, hp), lambda i, k: (0, 0)),   # W_neigh^T
                pl.BlockSpec((fp, hp), lambda i, k: (0, 0)),   # W_self^T
                pl.BlockSpec((1, hp), lambda i, k: (0, 0)),    # bias
            ],
            out_specs=pl.BlockSpec((tm, hp), lambda i, k: (i, 0)),
            scratch_shapes=[pltpu.VMEM((tm, fp), jnp.float32)],
        ),
        compiler_params=pltpu.CompilerParams(
            dimension_semantics=("parallel", "arbitrary"),
            vmem_limit_bytes=_VMEM_LIMIT,
        ),
        cost_estimate=pl.CostEstimate(flops=flops, transcendentals=0,
                                      bytes_accessed=bytes_accessed),
    )(a, x, x, dinv, wn, ws, b)


def _sage_conv2_pool(a, h1, dinv, p, wn, ws, b, *, tm, tk):
    """Returns per-row-tile partial pooled sums, shape (n_pad//tm, g, hp)."""
    n_pad = a.shape[0]
    hp = wn.shape[1]
    g = p.shape[0]
    grid = (n_pad // tm, n_pad // tk)
    ni = n_pad // tm
    c00 = lambda i, k: (0, 0)
    flops = (2 * n_pad * n_pad * hp + 4 * n_pad * hp * hp + 2 * g * n_pad * hp)
    bytes_accessed = (n_pad * n_pad * 2          # A (bf16)
                      + ni * n_pad * hp * 2      # h1 aggregation stream (bf16)
                      + n_pad * hp * 2           # h1 self-term (bf16)
                      + n_pad * 4                # 1/deg
                      + g * n_pad * 4            # mean-pool matrix
                      + 2 * hp * hp * 4 + hp * 4
                      + ni * g * hp * 4)         # partial pooled sums write
    return pl.pallas_call(
        _conv2_pool_kernel,
        out_shape=jax.ShapeDtypeStruct((ni, g, hp), jnp.float32),
        grid_spec=pltpu.PrefetchScalarGridSpec(
            num_scalar_prefetch=0,
            grid=grid,
            in_specs=[
                pl.BlockSpec((tm, tk), lambda i, k: (i, k)),   # A (bf16 counts)
                pl.BlockSpec((tk, hp), lambda i, k: (k, 0)),   # h1 rows (aggregation)
                pl.BlockSpec((tm, hp), lambda i, k: (i, 0)),   # h1 rows (self term)
                pl.BlockSpec((tm, 1), lambda i, k: (i, 0)),    # 1/deg
                pl.BlockSpec((g, tm), lambda i, k: (0, i)),    # mean-pool matrix tile
                pl.BlockSpec((hp, hp), c00),                   # conv2 W_neigh^T
                pl.BlockSpec((hp, hp), c00),                   # conv2 W_self^T
                pl.BlockSpec((1, hp), c00),                    # conv2 bias
            ],
            out_specs=pl.BlockSpec((1, g, hp), lambda i, k: (i, 0, 0)),
            scratch_shapes=[pltpu.VMEM((tm, hp), jnp.float32)],
        ),
        compiler_params=pltpu.CompilerParams(
            # Row axis is now independent (per-tile partial pools) -> megacore
            # parallel on v7x; only the reduction (k) axis must be sequential.
            dimension_semantics=("parallel", "arbitrary"),
            vmem_limit_bytes=_VMEM_LIMIT,
        ),
        cost_estimate=pl.CostEstimate(flops=flops, transcendentals=0,
                                      bytes_accessed=bytes_accessed),
    )(a, h1, h1, dinv, p, wn, ws, b)


@partial(jax.jit, static_argnames=("tm", "tk", "output_dim"))
def graphsage_forward(params, a, dinv, x, p, graph_attr, *, tm, tk, output_dim):
    h1 = _sage_conv1(a, x, dinv,
                     params["conv1_wn"], params["conv1_ws"], params["conv1_b"],
                     tm=tm, tk=tk)
    partials = _sage_conv2_pool(
        a, h1, dinv, p,
        params["conv2_wn"], params["conv2_ws"], params["conv2_b"],
        tm=tm, tk=tk)
    # Tiny reduce + MLP head in plain JAX (a few (num_graphs x hidden) matmuls).
    pooled = partials.sum(axis=0)                               # (g, hp), f32
    hi = jax.lax.Precision.HIGHEST
    z = jax.nn.relu(jnp.dot(pooled, params["fc1_wp"], precision=hi)
                    + jnp.dot(graph_attr, params["fc1_wa"], precision=hi)
                    + params["fc1_b"])
    out = jnp.dot(z, params["fc2_w"], precision=hi) + params["fc2_b"]
    return out[:, :output_dim]


# ---------------------------------------------------------------------------
# Parameters & input preparation (plain JAX glue)
# ---------------------------------------------------------------------------
def init_raw_params(key, num_node_features, num_graph_attributes, output_dim,
                    hidden_dim):
    """PyTorch-layout (unpadded) weights matching GraphSAGEModel's submodules."""
    ks = jax.random.split(key, 10)

    def lin(kw, kb, fan_in, fan_out):
        bound = 1.0 / np.sqrt(fan_in)
        w = jax.random.uniform(kw, (fan_out, fan_in), jnp.float32, -bound, bound)
        b = jax.random.uniform(kb, (fan_out,), jnp.float32, -bound, bound)
        return w, b

    wl1, bl1 = lin(ks[0], ks[1], num_node_features, hidden_dim)   # conv1.lin_l
    wr1, _ = lin(ks[2], ks[2], num_node_features, hidden_dim)     # conv1.lin_r
    wl2, bl2 = lin(ks[3], ks[4], hidden_dim, hidden_dim)          # conv2.lin_l
    wr2, _ = lin(ks[5], ks[5], hidden_dim, hidden_dim)            # conv2.lin_r
    w_fc1, b_fc1 = lin(ks[6], ks[7], hidden_dim + num_graph_attributes, hidden_dim)
    w_fc2, b_fc2 = lin(ks[8], ks[9], hidden_dim, output_dim)
    return dict(conv1=(wl1, wr1, bl1), conv2=(wl2, wr2, bl2),
                fc1=(w_fc1, b_fc1), fc2=(w_fc2, b_fc2))


def pad_params(raw, num_node_features, num_graph_attributes, output_dim,
               hidden_dim):
    """Kernel-layout params: [in, out] weights, feature dims padded to 128 lanes."""
    fp = _round_up(num_node_features, LANE)
    hp = _round_up(hidden_dim, LANE)
    ap = _round_up(num_graph_attributes, LANE)
    op = _round_up(output_dim, LANE)
    wl1, wr1, bl1 = raw["conv1"]
    wl2, wr2, bl2 = raw["conv2"]
    w_fc1, b_fc1 = raw["fc1"]
    w_fc2, b_fc2 = raw["fc2"]
    return dict(
        conv1_wn=_pad2(wl1.T, fp, hp), conv1_ws=_pad2(wr1.T, fp, hp),
        conv1_b=_pad2(bl1.reshape(1, -1), 1, hp),
        conv2_wn=_pad2(wl2.T, hp, hp), conv2_ws=_pad2(wr2.T, hp, hp),
        conv2_b=_pad2(bl2.reshape(1, -1), 1, hp),
        # fc1 split into pooled-feature and graph-attribute parts
        # (algebraically identical to concat([pooled, graph_attr]) @ W^T).
        fc1_wp=_pad2(w_fc1[:, :hidden_dim].T, hp, hp),
        fc1_wa=_pad2(w_fc1[:, hidden_dim:].T, ap, hp),
        fc1_b=_pad2(b_fc1.reshape(1, -1), 1, hp),
        fc2_w=_pad2(w_fc2.T, hp, op),
        fc2_b=_pad2(b_fc2.reshape(1, -1), 1, op),
    )


def prepare_graph_inputs(x, edge_index, batch, graph_attr, num_graphs, *, n_pad):
    """Dense bf16 edge-count adjacency, 1/deg, mean-pool matrix, padded features."""
    n, f = x.shape
    fp = _round_up(f, LANE)
    ap = _round_up(graph_attr.shape[1], LANE)
    src, dst = edge_index
    counts = jnp.zeros((n, n), jnp.float32).at[dst, src].add(1.0)  # A[i,j] = #edges j->i
    # bf16 stores small integers exactly only up to 256 (8-bit mantissa).
    if float(jnp.max(counts)) >= 256.0:
        raise ValueError("bf16 adjacency requires per-pair edge multiplicity < 256")
    deg = counts.sum(axis=1, keepdims=True)
    dinv = 1.0 / jnp.clip(deg, 1.0, None)
    onehot = (batch[None, :] == jnp.arange(num_graphs)[:, None]).astype(jnp.float32)
    pool = onehot / jnp.clip(onehot.sum(axis=1, keepdims=True), 1.0, None)
    return dict(
        a=_pad2(counts, n_pad, n_pad).astype(jnp.bfloat16),
        dinv=_pad2(dinv, n_pad, 1),
        x=_pad2(x, n_pad, fp).astype(jnp.bfloat16),   # bf16 MXU operand
        p=_pad2(pool, num_graphs, n_pad),
        graph_attr=_pad2(graph_attr, num_graphs, ap),
    )


def reference_forward(raw, x, edge_index, batch, graph_attr, num_graphs):
    """Pure-JAX reference implementing the PyTorch module's forward."""
    mm = partial(jnp.dot, precision=jax.lax.Precision.HIGHEST)
    n = x.shape[0]
    src, dst = edge_index
    a = jnp.zeros((n, n), jnp.float32).at[dst, src].add(1.0)
    deg = jnp.clip(a.sum(axis=1, keepdims=True), 1.0, None)
    wl1, wr1, bl1 = raw["conv1"]
    wl2, wr2, bl2 = raw["conv2"]
    w_fc1, b_fc1 = raw["fc1"]
    w_fc2, b_fc2 = raw["fc2"]
    h = jax.nn.relu(mm(mm(a, x) / deg, wl1.T) + mm(x, wr1.T) + bl1)
    h = mm(mm(a, h) / deg, wl2.T) + mm(h, wr2.T) + bl2
    onehot = (batch[None, :] == jnp.arange(num_graphs)[:, None]).astype(jnp.float32)
    pooled = mm(onehot, h) / jnp.clip(onehot.sum(axis=1, keepdims=True), 1.0, None)
    z = jax.nn.relu(mm(jnp.concatenate([pooled, graph_attr], axis=1), w_fc1.T) + b_fc1)
    return mm(z, w_fc2.T) + b_fc2


# ---------------------------------------------------------------------------
# Demo
# ---------------------------------------------------------------------------
if __name__ == "__main__":
    NUM_NODE_FEATURES = 8
    NUM_GRAPH_ATTRIBUTES = 4
    OUTPUT_DIM = 3
    HIDDEN_DIM = 32
    NODES_PER_GRAPH = 8
    NUM_GRAPHS = 2
    NUM_NODES = NODES_PER_GRAPH * NUM_GRAPHS

    key = jax.random.PRNGKey(0)
    k_param, k_x, k_attr = jax.random.split(key, 3)

    raw = init_raw_params(k_param, NUM_NODE_FEATURES, NUM_GRAPH_ATTRIBUTES,
                          OUTPUT_DIM, HIDDEN_DIM)
    params = pad_params(raw, NUM_NODE_FEATURES, NUM_GRAPH_ATTRIBUTES,
                        OUTPUT_DIM, HIDDEN_DIM)

    x = jax.random.normal(k_x, (NUM_NODES, NUM_NODE_FEATURES), jnp.float32)
    graph_attr = jax.random.normal(k_attr, (NUM_GRAPHS, NUM_GRAPH_ATTRIBUTES),
                                   jnp.float32)

    # Deterministic bidirectional ring edges inside each graph.
    src_list, dst_list = [], []
    for g in range(NUM_GRAPHS):
        base = g * NODES_PER_GRAPH
        for i in range(NODES_PER_GRAPH):
            u = base + i
            v = base + (i + 1) % NODES_PER_GRAPH
            src_list += [u, v]
            dst_list += [v, u]
    edge_index = jnp.array([src_list, dst_list], dtype=jnp.int32)
    batch = jnp.repeat(jnp.arange(NUM_GRAPHS, dtype=jnp.int32), NODES_PER_GRAPH)

    tm, tk, n_pad = _choose_tiles(NUM_NODES)
    inputs = prepare_graph_inputs(x, edge_index, batch, graph_attr, NUM_GRAPHS,
                                  n_pad=n_pad)

    out = graphsage_forward(params, inputs["a"], inputs["dinv"], inputs["x"],
                            inputs["p"], inputs["graph_attr"],
                            tm=tm, tk=tk, output_dim=OUTPUT_DIM)
    out = jax.block_until_ready(out)
    assert out.shape == (NUM_GRAPHS, OUTPUT_DIM)

    ref = jax.block_until_ready(
        reference_forward(raw, x, edge_index, batch, graph_attr, NUM_GRAPHS))
    # bf16 MXU operands (x, h1, A) round inputs to ~2^-9 relative; the f32
    # reference therefore differs by up to ~1%.  2e-2 gives comfortable margin.
    if not np.allclose(np.asarray(out), np.asarray(ref), rtol=2e-2, atol=2e-2):
        raise AssertionError(f"mismatch vs reference:\n{out}\n{ref}")
    print("KERNEL_OK")
</pallas_src>

<mosaic_0001>
module attributes {stable_mosaic.version = 11 : i64} {
  func.func @_conv2_pool_kernel(%arg0: i32, %arg1: i32, %arg2: memref<128x128xbf16, #tpu.memory_space<vmem>>, %arg3: memref<128x128xbf16, #tpu.memory_space<vmem>>, %arg4: memref<128x128xbf16, #tpu.memory_space<vmem>>, %arg5: memref<128x1xf32, #tpu.memory_space<vmem>>, %arg6: memref<2x128xf32, #tpu.memory_space<vmem>>, %arg7: memref<128x128xf32, #tpu.memory_space<vmem>>, %arg8: memref<128x128xf32, #tpu.memory_space<vmem>>, %arg9: memref<1x128xf32, #tpu.memory_space<vmem>>, %arg10: memref<1x2x128xf32, #tpu.memory_space<vmem>>, %arg11: memref<128x128xf32, #tpu.memory_space<vmem>>) attributes {dimension_semantics = [#tpu.dimension_semantics<parallel>, #tpu.dimension_semantics<arbitrary>], iteration_bounds = array<i64: 1, 1>, scalar_prefetch = 0 : i64, scratch_operands = 1 : i64, tpu.core_type = #tpu.core_type<tc>, window_params = [{transform_indices = @transform_0, window_bounds = array<i64: 128, 128>}, {transform_indices = @transform_1, window_bounds = array<i64: 128, 128>}, {transform_indices = @transform_2, window_bounds = array<i64: 128, 128>}, {transform_indices = @transform_3, window_bounds = array<i64: 128, 1>}, {transform_indices = @transform_4, window_bounds = array<i64: 2, 128>}, {pipeline_mode = #tpu.pipeline_mode<synchronous>, transform_indices = @transform_5, window_bounds = array<i64: 128, 128>}, {pipeline_mode = #tpu.pipeline_mode<synchronous>, transform_indices = @transform_6, window_bounds = array<i64: 128, 128>}, {pipeline_mode = #tpu.pipeline_mode<synchronous>, transform_indices = @transform_7, window_bounds = array<i64: 1, 128>}, {transform_indices = @transform_8, window_bounds = array<i64: 1, 2, 128>}]} {
    %c0_i32 = arith.constant 0 : i32
    %0 = arith.cmpi eq, %arg1, %c0_i32 : i32
    %1 = arith.extui %0 : i1 to i32
    %c0_i32_0 = arith.constant 0 : i32
    %2 = arith.cmpi ne, %1, %c0_i32_0 : i32
    scf.if %2 {
      %cst_10 = arith.constant 0.000000e+00 : f32
      %12 = vector.broadcast %cst_10 : f32 to vector<128x128xf32>
      %c0_11 = arith.constant 0 : index
      %c0_12 = arith.constant 0 : index
      %13 = vector.load %arg11[%c0_11, %c0_12] : memref<128x128xf32, #tpu.memory_space<vmem>>, vector<128x128xf32>
      tpu.vector_store %arg11[%c0_11, %c0_12], %12 {strides = array<i32>} : memref<128x128xf32, #tpu.memory_space<vmem>>, vector<128x128xf32>,
    } else {
    }
    %c0 = arith.constant 0 : index
    %c0_1 = arith.constant 0 : index
    %3 = vector.load %arg11[%c0, %c0_1] : memref<128x128xf32, #tpu.memory_space<vmem>>, vector<128x128xf32>
    %c0_2 = arith.constant 0 : index
    %c0_3 = arith.constant 0 : index
    %4 = vector.load %arg2[%c0_2, %c0_3] : memref<128x128xbf16, #tpu.memory_space<vmem>>, vector<128x128xbf16>
    %c0_4 = arith.constant 0 : index
    %c0_5 = arith.constant 0 : index
    %5 = vector.load %arg3[%c0_4, %c0_5] : memref<128x128xbf16, #tpu.memory_space<vmem>>, vector<128x128xbf16>
    %cst = arith.constant dense<0.000000e+00> : vector<128x128xf32>
    %6 = tpu.matmul %4, %5, %cst {dimension_numbers = #tpu.dot_dimension_numbers<[1], [0], [0], [1], [0, 0, 1, 1], [], []>} : vector<128x128xbf16>, vector<128x128xbf16>, vector<128x128xf32> -> vector<128x128xf32>
    %7 = arith.addf %3, %6 : vector<128x128xf32>
    %c0_6 = arith.constant 0 : index
    %c0_7 = arith.constant 0 : index
    %8 = vector.load %arg11[%c0_6, %c0_7] : memref<128x128xf32, #tpu.memory_space<vmem>>, vector<128x128xf32>
    tpu.vector_store %arg11[%c0_6, %c0_7], %7 {strides = array<i32>} : memref<128x128xf32, #tpu.memory_space<vmem>>, vector<128x128xf32>,
    %c0_i32_8 = arith.constant 0 : i32
    %9 = arith.cmpi eq, %arg1, %c0_i32_8 : i32
    %10 = arith.extui %9 : i1 to i32
    %c0_i32_9 = arith.constant 0 : i32
    %11 = arith.cmpi ne, %10, %c0_i32_9 : i32
    scf.if %11 {
      %c0_10 = arith.constant 0 : index
      %c0_11 = arith.constant 0 : index
      %12 = vector.load %arg11[%c0_10, %c0_11] : memref<128x128xf32, #tpu.memory_space<vmem>>, vector<128x128xf32>
      %c0_12 = arith.constant 0 : index
      %c0_13 = arith.constant 0 : index
      %13 = vector.load %arg5[%c0_12, %c0_13] : memref<128x1xf32, #tpu.memory_space<vmem>>, vector<128x1xf32>
      %14 = vector.broadcast %13 : vector<128x1xf32> to vector<128x128xf32>
      %15 = arith.mulf %12, %14 : vector<128x128xf32>
      %c0_14 = arith.constant 0 : index
      %c0_15 = arith.constant 0 : index
      %16 = vector.load %arg7[%c0_14, %c0_15] : memref<128x128xf32, #tpu.memory_space<vmem>>, vector<128x128xf32>
      %cst_16 = arith.constant dense<0.000000e+00> : vector<128x128xf32>
      %17 = tpu.matmul %15, %16, %cst_16 {dimension_numbers = #tpu.dot_dimension_numbers<[1], [0], [0], [1], [0, 0, 1, 1], [], []>} : vector<128x128xf32>, vector<128x128xf32>, vector<128x128xf32> -> vector<128x128xf32>
      %c0_17 = arith.constant 0 : index
      %c0_18 = arith.constant 0 : index
      %18 = vector.load %arg4[%c0_17, %c0_18] : memref<128x128xbf16, #tpu.memory_space<vmem>>, vector<128x128xbf16>
      %19 = arith.extf %18 : vector<128x128xbf16> to vector<128x128xf32>
      %c0_19 = arith.constant 0 : index
      %c0_20 = arith.constant 0 : index
      %20 = vector.load %arg8[%c0_19, %c0_20] : memref<128x128xf32, #tpu.memory_space<vmem>>, vector<128x128xf32>
      %cst_21 = arith.constant dense<0.000000e+00> : vector<128x128xf32>
      %21 = tpu.matmul %19, %20, %cst_21 {dimension_numbers = #tpu.dot_dimension_numbers<[1], [0], [0], [1], [0, 0, 1, 1], [], []>} : vector<128x128xf32>, vector<128x128xf32>, vector<128x128xf32> -> vector<128x128xf32>
      %22 = arith.addf %17, %21 : vector<128x128xf32>
      %c0_22 = arith.constant 0 : index
      %c0_23 = arith.constant 0 : index
      %23 = vector.load %arg9[%c0_22, %c0_23] : memref<1x128xf32, #tpu.memory_space<vmem>>, vector<1x128xf32>
      %24 = vector.broadcast %23 : vector<1x128xf32> to vector<128x128xf32>
      %25 = arith.addf %22, %24 : vector<128x128xf32>
      %c0_24 = arith.constant 0 : index
      %c0_25 = arith.constant 0 : index
      %26 = vector.load %arg6[%c0_24, %c0_25] : memref<2x128xf32, #tpu.memory_space<vmem>>, vector<2x128xf32>
      %cst_26 = arith.constant dense<0.000000e+00> : vector<2x128xf32>
      %27 = tpu.matmul %26, %25, %cst_26 {dimension_numbers = #tpu.dot_dimension_numbers<[1], [0], [0], [1], [0, 0, 1, 1], [], []>} : vector<2x128xf32>, vector<128x128xf32>, vector<2x128xf32> -> vector<2x128xf32>
      %c0_27 = arith.constant 0 : index
      %c0_28 = arith.constant 0 : index
      %c0_29 = arith.constant 0 : index
      %28 = vector.load %arg10[%c0_27, %c0_28, %c0_29] : memref<1x2x128xf32, #tpu.memory_space<vmem>>, vector<1x2x128xf32>
      %29 = vector.shape_cast %28 : vector<1x2x128xf32> to vector<2x128xf32>
      %30 = vector.shape_cast %27 : vector<2x128xf32> to vector<1x2x128xf32>
      tpu.vector_store %arg10[%c0_27, %c0_28, %c0_29], %30 {strides = array<i32>} : memref<1x2x128xf32, #tpu.memory_space<vmem>>, vector<1x2x128xf32>,
    } else {
    }
    return
  }
  func.func @transform_0(%arg0: i32, %arg1: i32) -> (i32, i32) {
    %c0_i32 = arith.constant 0 : i32
    return %arg0, %arg1 : i32, i32
  }
  func.func @transform_1(%arg0: i32, %arg1: i32) -> (i32, i32) {
    %c0_i32 = arith.constant 0 : i32
    %c0_i32_0 = arith.constant 0 : i32
    return %arg1, %c0_i32 : i32, i32
  }
  func.func @transform_2(%arg0: i32, %arg1: i32) -> (i32, i32) {
    %c0_i32 = arith.constant 0 : i32
    %c0_i32_0 = arith.constant 0 : i32
    return %arg0, %c0_i32 : i32, i32
  }
  func.func @transform_3(%arg0: i32, %arg1: i32) -> (i32, i32) {
    %c0_i32 = arith.constant 0 : i32
    %c0_i32_0 = arith.constant 0 : i32
    return %arg0, %c0_i32 : i32, i32
  }
  func.func @transform_4(%arg0: i32, %arg1: i32) -> (i32, i32) {
    %c0_i32 = arith.constant 0 : i32
    %c0_i32_0 = arith.constant 0 : i32
    return %c0_i32, %arg0 : i32, i32
  }
  func.func @transform_5(%arg0: i32, %arg1: i32) -> (i32, i32) {
    %c0_i32 = arith.constant 0 : i32
    %c0_i32_0 = arith.constant 0 : i32
    %c0_i32_1 = arith.constant 0 : i32
    return %c0_i32, %c0_i32_0 : i32, i32
  }
  func.func @transform_6(%arg0: i32, %arg1: i32) -> (i32, i32) {
    %c0_i32 = arith.constant 0 : i32
    %c0_i32_0 = arith.constant 0 : i32
    %c0_i32_1 = arith.constant 0 : i32
    return %c0_i32, %c0_i32_0 : i32, i32
  }
  func.func @transform_7(%arg0: i32, %arg1: i32) -> (i32, i32) {
    %c0_i32 = arith.constant 0 : i32
    %c0_i32_0 = arith.constant 0 : i32
    %c0_i32_1 = arith.constant 0 : i32
    return %c0_i32, %c0_i32_0 : i32, i32
  }
  func.func @transform_8(%arg0: i32, %arg1: i32) -> (i32, i32, i32) {
    %c0_i32 = arith.constant 0 : i32
    %c0_i32_0 = arith.constant 0 : i32
    %c0_i32_1 = arith.constant 0 : i32
    return %arg0, %c0_i32, %c0_i32_0 : i32, i32, i32
  }
}

module attributes {stable_mosaic.version = 11 : i64} {
  func.func @_conv1_kernel(%arg0: i32, %arg1: i32, %arg2: memref<128x128xbf16, #tpu.memory_space<vmem>>, %arg3: memref<128x128xbf16, #tpu.memory_space<vmem>>, %arg4: memref<128x128xbf16, #tpu.memory_space<vmem>>, %arg5: memref<128x1xf32, #tpu.memory_space<vmem>>, %arg6: memref<128x128xf32, #tpu.memory_space<vmem>>, %arg7: memref<128x128xf32, #tpu.memory_space<vmem>>, %arg8: memref<1x128xf32, #tpu.memory_space<vmem>>, %arg9: memref<128x128xbf16, #tpu.memory_space<vmem>>, %arg10: memref<128x128xf32, #tpu.memory_space<vmem>>) attributes {dimension_semantics = [#tpu.dimension_semantics<parallel>, #tpu.dimension_semantics<arbitrary>], iteration_bounds = array<i64: 1, 1>, scalar_prefetch = 0 : i64, scratch_operands = 1 : i64, tpu.core_type = #tpu.core_type<tc>, window_params = [{transform_indices = @transform_0, window_bounds = array<i64: 128, 128>}, {transform_indices = @transform_1, window_bounds = array<i64: 128, 128>}, {transform_indices = @transform_2, window_bounds = array<i64: 128, 128>}, {transform_indices = @transform_3, window_bounds = array<i64: 128, 1>}, {pipeline_mode = #tpu.pipeline_mode<synchronous>, transform_indices = @transform_4, window_bounds = array<i64: 128, 128>}, {pipeline_mode = #tpu.pipeline_mode<synchronous>, transform_indices = @transform_5, window_bounds = array<i64: 128, 128>}, {pipeline_mode = #tpu.pipeline_mode<synchronous>, transform_indices = @transform_6, window_bounds = array<i64: 1, 128>}, {transform_indices = @transform_7, window_bounds = array<i64: 128, 128>}]} {
    %c0_i32 = arith.constant 0 : i32
    %0 = arith.cmpi eq, %arg1, %c0_i32 : i32
    %1 = arith.extui %0 : i1 to i32
    %c0_i32_0 = arith.constant 0 : i32
    %2 = arith.cmpi ne, %1, %c0_i32_0 : i32
    scf.if %2 {
      %cst_10 = arith.constant 0.000000e+00 : f32
      %12 = vector.broadcast %cst_10 : f32 to vector<128x128xf32>
      %c0_11 = arith.constant 0 : index
      %c0_12 = arith.constant 0 : index
      %13 = vector.load %arg10[%c0_11, %c0_12] : memref<128x128xf32, #tpu.memory_space<vmem>>, vector<128x128xf32>
      tpu.vector_store %arg10[%c0_11, %c0_12], %12 {strides = array<i32>} : memref<128x128xf32, #tpu.memory_space<vmem>>, vector<128x128xf32>,
    } else {
    }
    %c0 = arith.constant 0 : index
    %c0_1 = arith.constant 0 : index
    %3 = vector.load %arg10[%c0, %c0_1] : memref<128x128xf32, #tpu.memory_space<vmem>>, vector<128x128xf32>
    %c0_2 = arith.constant 0 : index
    %c0_3 = arith.constant 0 : index
    %4 = vector.load %arg2[%c0_2, %c0_3] : memref<128x128xbf16, #tpu.memory_space<vmem>>, vector<128x128xbf16>
    %c0_4 = arith.constant 0 : index
    %c0_5 = arith.constant 0 : index
    %5 = vector.load %arg3[%c0_4, %c0_5] : memref<128x128xbf16, #tpu.memory_space<vmem>>, vector<128x128xbf16>
    %cst = arith.constant dense<0.000000e+00> : vector<128x128xf32>
    %6 = tpu.matmul %4, %5, %cst {dimension_numbers = #tpu.dot_dimension_numbers<[1], [0], [0], [1], [0, 0, 1, 1], [], []>} : vector<128x128xbf16>, vector<128x128xbf16>, vector<128x128xf32> -> vector<128x128xf32>
    %7 = arith.addf %3, %6 : vector<128x128xf32>
    %c0_6 = arith.constant 0 : index
    %c0_7 = arith.constant 0 : index
    %8 = vector.load %arg10[%c0_6, %c0_7] : memref<128x128xf32, #tpu.memory_space<vmem>>, vector<128x128xf32>
    tpu.vector_store %arg10[%c0_6, %c0_7], %7 {strides = array<i32>} : memref<128x128xf32, #tpu.memory_space<vmem>>, vector<128x128xf32>,
    %c0_i32_8 = arith.constant 0 : i32
    %9 = arith.cmpi eq, %arg1, %c0_i32_8 : i32
    %10 = arith.extui %9 : i1 to i32
    %c0_i32_9 = arith.constant 0 : i32
    %11 = arith.cmpi ne, %10, %c0_i32_9 : i32
    scf.if %11 {
      %c0_10 = arith.constant 0 : index
      %c0_11 = arith.constant 0 : index
      %12 = vector.load %arg10[%c0_10, %c0_11] : memref<128x128xf32, #tpu.memory_space<vmem>>, vector<128x128xf32>
      %c0_12 = arith.constant 0 : index
      %c0_13 = arith.constant 0 : index
      %13 = vector.load %arg5[%c0_12, %c0_13] : memref<128x1xf32, #tpu.memory_space<vmem>>, vector<128x1xf32>
      %14 = vector.broadcast %13 : vector<128x1xf32> to vector<128x128xf32>
      %15 = arith.mulf %12, %14 : vector<128x128xf32>
      %c0_14 = arith.constant 0 : index
      %c0_15 = arith.constant 0 : index
      %16 = vector.load %arg6[%c0_14, %c0_15] : memref<128x128xf32, #tpu.memory_space<vmem>>, vector<128x128xf32>
      %cst_16 = arith.constant dense<0.000000e+00> : vector<128x128xf32>
      %17 = tpu.matmul %15, %16, %cst_16 {dimension_numbers = #tpu.dot_dimension_numbers<[1], [0], [0], [1], [0, 0, 1, 1], [], []>} : vector<128x128xf32>, vector<128x128xf32>, vector<128x128xf32> -> vector<128x128xf32>
      %c0_17 = arith.constant 0 : index
      %c0_18 = arith.constant 0 : index
      %18 = vector.load %arg4[%c0_17, %c0_18] : memref<128x128xbf16, #tpu.memory_space<vmem>>, vector<128x128xbf16>
      %19 = arith.extf %18 : vector<128x128xbf16> to vector<128x128xf32>
      %c0_19 = arith.constant 0 : index
      %c0_20 = arith.constant 0 : index
      %20 = vector.load %arg7[%c0_19, %c0_20] : memref<128x128xf32, #tpu.memory_space<vmem>>, vector<128x128xf32>
      %cst_21 = arith.constant dense<0.000000e+00> : vector<128x128xf32>
      %21 = tpu.matmul %19, %20, %cst_21 {dimension_numbers = #tpu.dot_dimension_numbers<[1], [0], [0], [1], [0, 0, 1, 1], [], []>} : vector<128x128xf32>, vector<128x128xf32>, vector<128x128xf32> -> vector<128x128xf32>
      %22 = arith.addf %17, %21 : vector<128x128xf32>
      %c0_22 = arith.constant 0 : index
      %c0_23 = arith.constant 0 : index
      %23 = vector.load %arg8[%c0_22, %c0_23] : memref<1x128xf32, #tpu.memory_space<vmem>>, vector<1x128xf32>
      %24 = vector.broadcast %23 : vector<1x128xf32> to vector<128x128xf32>
      %25 = arith.addf %22, %24 : vector<128x128xf32>
      %cst_24 = arith.constant 0.000000e+00 : f32
      %26 = vector.broadcast %cst_24 : f32 to vector<128x128xf32>
      %27 = arith.maximumf %25, %26 : vector<128x128xf32>
      %28 = arith.truncf %27 : vector<128x128xf32> to vector<128x128xbf16>
      %c0_25 = arith.constant 0 : index
      %c0_26 = arith.constant 0 : index
      %29 = vector.load %arg9[%c0_25, %c0_26] : memref<128x128xbf16, #tpu.memory_space<vmem>>, vector<128x128xbf16>
      tpu.vector_store %arg9[%c0_25, %c0_26], %28 {strides = array<i32>} : memref<128x128xbf16, #tpu.memory_space<vmem>>, vector<128x128xbf16>,
    } else {
    }
    return
  }
  func.func @transform_0(%arg0: i32, %arg1: i32) -> (i32, i32) {
    %c0_i32 = arith.constant 0 : i32
    return %arg0, %arg1 : i32, i32
  }
  func.func @transform_1(%arg0: i32, %arg1: i32) -> (i32, i32) {
    %c0_i32 = arith.constant 0 : i32
    %c0_i32_0 = arith.constant 0 : i32
    return %arg1, %c0_i32 : i32, i32
  }
  func.func @transform_2(%arg0: i32, %arg1: i32) -> (i32, i32) {
    %c0_i32 = arith.constant 0 : i32
    %c0_i32_0 = arith.constant 0 : i32
    return %arg0, %c0_i32 : i32, i32
  }
  func.func @transform_3(%arg0: i32, %arg1: i32) -> (i32, i32) {
    %c0_i32 = arith.constant 0 : i32
    %c0_i32_0 = arith.constant 0 : i32
    return %arg0, %c0_i32 : i32, i32
  }
  func.func @transform_4(%arg0: i32, %arg1: i32) -> (i32, i32) {
    %c0_i32 = arith.constant 0 : i32
    %c0_i32_0 = arith.constant 0 : i32
    %c0_i32_1 = arith.constant 0 : i32
    return %c0_i32, %c0_i32_0 : i32, i32
  }
  func.func @transform_5(%arg0: i32, %arg1: i32) -> (i32, i32) {
    %c0_i32 = arith.constant 0 : i32
    %c0_i32_0 = arith.constant 0 : i32
    %c0_i32_1 = arith.constant 0 : i32
    return %c0_i32, %c0_i32_0 : i32, i32
  }
  func.func @transform_6(%arg0: i32, %arg1: i32) -> (i32, i32) {
    %c0_i32 = arith.constant 0 : i32
    %c0_i32_0 = arith.constant 0 : i32
    %c0_i32_1 = arith.constant 0 : i32
    return %c0_i32, %c0_i32_0 : i32, i32
  }
  func.func @transform_7(%arg0: i32, %arg1: i32) -> (i32, i32) {
    %c0_i32 = arith.constant 0 : i32
    %c0_i32_0 = arith.constant 0 : i32
    return %arg0, %c0_i32 : i32, i32
  }
}

</mosaic_0001>

<llo_original>
// kernel: graphsage_forward.2
$region0: #{graphsage_forward.2}
  #allocation0 [shape = 'u32[]', space=smem, size = 0x4, offset = 0x4, fixed_abs, tag = 'smem constant byte address 0x4 - core index']
  #allocation1 [shape = 'u32[144,128]{1,0:T(1,128)}', space=vmem, size = 0x12000, scoped, tag = 'internal scratch']
  #allocation2 [shape = 'f32[128,128]{1,0:T(8,128)}', space=vmem, size = 0x10000, scoped, tag = 'scratch operand']
  %s0 = inlined_call_operand.vmem [shape: bf16[128,128], index: 0, kind: input, shape index: {}]
  %s1 = inlined_call_operand.vmem [shape: bf16[128,128], index: 1, kind: input, shape index: {}, may-alias: {1,2}]
  %s2 = inlined_call_operand.vmem [shape: bf16[128,128], index: 2, kind: input, shape index: {}, may-alias: {1,2}]
  %s3 = inlined_call_operand.vmem [shape: f32[128,1], index: 3, kind: input, shape index: {}]
  %s4 = inlined_call_operand.hbm [shape: f32[128,128], index: 4, kind: input, shape index: {}]
  %s5 = inlined_call_operand.hbm [shape: f32[128,128], index: 5, kind: input, shape index: {}]
  %s6 = inlined_call_operand.vmem [shape: f32[1,128], index: 6, kind: input, shape index: {}]
  %s7 = inlined_call_operand.vmem [shape: bf16[128,128], index: 7, kind: output, shape index: {}]
  %s8 = sld [smem:[#allocation0]]
  $region54: #{graphsage_forward.2} parent=0
    _
  %s10 = ssub.s32 1, %s8
  %s11 = scalar_select 0, %s10, %s8
  $region1: #{graphsage_forward.2} parent=0
    #allocation3 [shape = 'u8[65536]{0}', space=vmem, size = 0x10000, scoped, tag = 'input window, operand 4, single buffered']
    #allocation4 [shape = 's32[1]{0}', space=sflag, size = 0x4, scoped, tag = 'scoped memory for graphsage_forward.2']
    #allocation5 [shape = 'u8[65536]{0}', space=vmem, size = 0x10000, scoped, tag = 'input window, operand 5, single buffered']
    #allocation6 [shape = 's32[1]{0}', space=sflag, size = 0x4, scoped, tag = 'scoped memory for graphsage_forward.2']
    %12 = vsyncpa [#allocation4], 0
    %13 = vsyncpa [#allocation6], 0
    // Predicated region
    $region2: #{graphsage_forward.2} parent=1 // pred_check
      _
    $region3: #{graphsage_forward.2} parent=1 // pred_check_branch
      %15 = sbr.rel (0) target = $region5
    $region4: #{graphsage_forward.2} parent=1 // pred_region
      _
    $region5: #{graphsage_forward.2} parent=1 // pred_fallthru
      _
    // Predicated region
    $region6: #{graphsage_forward.2} parent=1 // pred_check
      _
    $region7: #{graphsage_forward.2} parent=1 // pred_check_branch
      %17 = sbr.rel (0) target = $region9
    $region8: #{graphsage_forward.2} parent=1 // pred_region
      _
    $region9: #{graphsage_forward.2} parent=1 // pred_fallthru
      _
    // Predicated region
    $region10: #{graphsage_forward.2} parent=1 // pred_check
      _
    $region11: #{graphsage_forward.2} parent=1 // pred_check_branch
      %19 = sbr.rel (0) target = $region13
    $region12: #{graphsage_forward.2} parent=1 // pred_region
      _
    $region13: #{graphsage_forward.2} parent=1 // pred_fallthru
      _
    // Predicated region
    $region14: #{graphsage_forward.2} parent=1 // pred_check
      _
    $region15: #{graphsage_forward.2} parent=1 // pred_check_branch
      %21 = sbr.rel (0) target = $region17
    $region16: #{graphsage_forward.2} parent=1 // pred_region
      _
    $region17: #{graphsage_forward.2} parent=1 // pred_fallthru
      _
    // Predicated region
    $region18: #{graphsage_forward.2} parent=1 // pred_check
      _
    $region19: #{graphsage_forward.2} parent=1 // pred_check_branch
      %23 = sbr.rel (0) target = $region21
    $region20: #{graphsage_forward.2} parent=1 // pred_region
      %s25 = ssub.s32 2048, 2048
      %26 = vsyncadd [#allocation4], %s25
      %s27 = sshll.u32 [#allocation3], 4
      %s28 = int_to_ptr.vmem [resolvable:$true] %s27
      %33 = dma.hbm_to_vmem [thread:$0]  %s4, 2048, %s28, [#allocation4], 128, 128, 8
    $region21: #{graphsage_forward.2} parent=1 // pred_fallthru
      _
    // Predicated region
    $region22: #{graphsage_forward.2} parent=1 // pred_check
      _
    $region23: #{graphsage_forward.2} parent=1 // pred_check_branch
      %35 = sbr.rel (0) target = $region25
    $region24: #{graphsage_forward.2} parent=1 // pred_region
      %s37 = ssub.s32 2048, 2048
      %38 = vsyncadd [#allocation6], %s37
      %s39 = sshll.u32 [#allocation5], 4
      %s40 = int_to_ptr.vmem [resolvable:$true] %s39
      %45 = dma.hbm_to_vmem [thread:$0]  %s5, 2048, %s40, [#allocation6], 128, 128, 8
    $region25: #{graphsage_forward.2} parent=1 // pred_fallthru
      _
    // Predicated region
    $region26: #{graphsage_forward.2} parent=1 // pred_check
      _
    $region27: #{graphsage_forward.2} parent=1 // pred_check_branch
      %47 = sbr.rel (0) target = $region29
    $region28: #{graphsage_forward.2} parent=1 // pred_region
      _
    $region29: #{graphsage_forward.2} parent=1 // pred_fallthru
      _
    // Predicated region
    $region30: #{graphsage_forward.2} parent=1 // pred_check
      _
    $region31: #{graphsage_forward.2} parent=1 // pred_check_branch
      %49 = sbr.rel (0) target = $region33
    $region32: #{graphsage_forward.2} parent=1 // pred_region
      %50 = dma.done [#allocation4], 2048
    $region33: #{graphsage_forward.2} parent=1 // pred_fallthru
      _
    // Predicated region
    $region34: #{graphsage_forward.2} parent=1 // pred_check
      _
    $region35: #{graphsage_forward.2} parent=1 // pred_check_branch
      %52 = sbr.rel (0) target = $region37
    $region36: #{graphsage_forward.2} parent=1 // pred_region
      %53 = dma.done [#allocation6], 2048
    $region37: #{graphsage_forward.2} parent=1 // pred_fallthru
      _
    %p55 = scmp.eq.s32.totalorder 0, 0
    // Predicated region
    $region38: #{graphsage_forward.2} parent=1 // pred_check
      %p56 = pneg %p55
    $region39: #{graphsage_forward.2} parent=1 // pred_check_branch
      %58 = sbr.rel (%p56) target = $region41
    $region40: #{graphsage_forward.2} parent=1 // pred_region
      %59 = vst [vmem:[#allocation2] sm:$0xff] 0.0
      %60 = vst [vmem:[#allocation2 + $0x8] sm:$0xff] 0.0
      %61 = vst [vmem:[#allocation2 + $0x10] sm:$0xff] 0.0
      %62 = vst [vmem:[#allocation2 + $0x18] sm:$0xff] 0.0
      %63 = vst [vmem:[#allocation2 + $0x20] sm:$0xff] 0.0
      %64 = vst [vmem:[#allocation2 + $0x28] sm:$0xff] 0.0
      %65 = vst [vmem:[#allocation2 + $0x30] sm:$0xff] 0.0
      %66 = vst [vmem:[#allocation2 + $0x38] sm:$0xff] 0.0
      %67 = vst [vmem:[#allocation2 + $0x40] sm:$0xff] 0.0
      %68 = vst [vmem:[#allocation2 + $0x48] sm:$0xff] 0.0
      %69 = vst [vmem:[#allocation2 + $0x50] sm:$0xff] 0.0
      %70 = vst [vmem:[#allocation2 + $0x58] sm:$0xff] 0.0
      %71 = vst [vmem:[#allocation2 + $0x60] sm:$0xff] 0.0
      %72 = vst [vmem:[#allocation2 + $0x68] sm:$0xff] 0.0
      %73 = vst [vmem:[#allocation2 + $0x70] sm:$0xff] 0.0
      %74 = vst [vmem:[#allocation2 + $0x78] sm:$0xff] 0.0
    $region41: #{graphsage_forward.2} parent=1 // pred_fallthru
      _
    %v75 = vld [vmem:[#allocation2] sm:$0xff]
    %v76 = vld [vmem:[#allocation2 + $0x8] sm:$0xff]
    %v77 = vld [vmem:[#allocation2 + $0x10] sm:$0xff]
    %v78 = vld [vmem:[#allocation2 + $0x18] sm:$0xff]
    %v79 = vld [vmem:[#allocation2 + $0x20] sm:$0xff]
    %v80 = vld [vmem:[#allocation2 + $0x28] sm:$0xff]
    %v81 = vld [vmem:[#allocation2 + $0x30] sm:$0xff]
    %v82 = vld [vmem:[#allocation2 + $0x38] sm:$0xff]
    %v83 = vld [vmem:[#allocation2 + $0x40] sm:$0xff]
    %v84 = vld [vmem:[#allocation2 + $0x48] sm:$0xff]
    %v85 = vld [vmem:[#allocation2 + $0x50] sm:$0xff]
    %v86 = vld [vmem:[#allocation2 + $0x58] sm:$0xff]
    %v87 = vld [vmem:[#allocation2 + $0x60] sm:$0xff]
    %v88 = vld [vmem:[#allocation2 + $0x68] sm:$0xff]
    %v89 = vld [vmem:[#allocation2 + $0x70] sm:$0xff]
    %v90 = vld [vmem:[#allocation2 + $0x78] sm:$0xff]
    %v91 = vld [vmem:[%s0] sm:$0xf]
    %v92 = vld [vmem:[%s0 + $0x4] sm:$0xf]
    %v93 = vld [vmem:[%s0 + $0x8] sm:$0xf]
    %v94 = vld [vmem:[%s0 + $0xc] sm:$0xf]
    %v95 = vld [vmem:[%s0 + $0x10] sm:$0xf]
    %v96 = vld [vmem:[%s0 + $0x14] sm:$0xf]
    %v97 = vld [vmem:[%s0 + $0x18] sm:$0xf]
    %v98 = vld [vmem:[%s0 + $0x1c] sm:$0xf]
    %v99 = vld [vmem:[%s0 + $0x20] sm:$0xf]
    %v100 = vld [vmem:[%s0 + $0x24] sm:$0xf]
    %v101 = vld [vmem:[%s0 + $0x28] sm:$0xf]
    %v102 = vld [vmem:[%s0 + $0x2c] sm:$0xf]
    %v103 = vld [vmem:[%s0 + $0x30] sm:$0xf]
    %v104 = vld [vmem:[%s0 + $0x34] sm:$0xf]
    %v105 = vld [vmem:[%s0 + $0x38] sm:$0xf]
    %v106 = vld [vmem:[%s0 + $0x3c] sm:$0xf]
    %v107 = vld [vmem:[%s1] sm:$0xf]
    %v108 = vld [vmem:[%s1 + $0x4] sm:$0xf]
    %v109 = vld [vmem:[%s1 + $0x8] sm:$0xf]
    %v110 = vld [vmem:[%s1 + $0xc] sm:$0xf]
    %v111 = vld [vmem:[%s1 + $0x10] sm:$0xf]
    %v112 = vld [vmem:[%s1 + $0x14] sm:$0xf]
    %v113 = vld [vmem:[%s1 + $0x18] sm:$0xf]
    %v114 = vld [vmem:[%s1 + $0x1c] sm:$0xf]
    %v115 = vld [vmem:[%s1 + $0x20] sm:$0xf]
    %v116 = vld [vmem:[%s1 + $0x24] sm:$0xf]
    %v117 = vld [vmem:[%s1 + $0x28] sm:$0xf]
    %v118 = vld [vmem:[%s1 + $0x2c] sm:$0xf]
    %v119 = vld [vmem:[%s1 + $0x30] sm:$0xf]
    %v120 = vld [vmem:[%s1 + $0x34] sm:$0xf]
    %v121 = vld [vmem:[%s1 + $0x38] sm:$0xf]
    %v122 = vld [vmem:[%s1 + $0x3c] sm:$0xf]
    %v139 = vunpack.c.l.b16 %v91
    %v140 = vunpack.c.l.b16 %v92
    %v141 = vunpack.c.l.b16 %v93
    %v142 = vunpack.c.l.b16 %v94
    %v143 = vunpack.c.l.b16 %v95
    %v144 = vunpack.c.l.b16 %v96
    %v145 = vunpack.c.l.b16 %v97
    %v146 = vunpack.c.l.b16 %v98
    %v147 = vunpack.c.l.b16 %v99
    %v148 = vunpack.c.l.b16 %v100
    %v149 = vunpack.c.l.b16 %v101
    %v150 = vunpack.c.l.b16 %v102
    %v151 = vunpack.c.l.b16 %v103
    %v152 = vunpack.c.l.b16 %v104
    %v153 = vunpack.c.l.b16 %v105
    %v154 = vunpack.c.l.b16 %v106
    %v155 = vpack.c.b16 %v140, %v139
    %v156 = vpack.c.b16 %v142, %v141
    %v157 = vpack.c.b16 %v144, %v143
    %v158 = vpack.c.b16 %v146, %v145
    %v159 = vpack.c.b16 %v148, %v147
    %v160 = vpack.c.b16 %v150, %v149
    %v161 = vpack.c.b16 %v152, %v151
    %v162 = vpack.c.b16 %v154, %v153
    %v187 = vunpack.c.l.b16 %v107
    %v188 = vunpack.c.l.b16 %v108
    %v189 = vunpack.c.l.b16 %v109
    %v190 = vunpack.c.l.b16 %v110
    %v191 = vunpack.c.l.b16 %v111
    %v192 = vunpack.c.l.b16 %v112
    %v193 = vunpack.c.l.b16 %v113
    %v194 = vunpack.c.l.b16 %v114
    %v195 = vunpack.c.l.b16 %v115
    %v196 = vunpack.c.l.b16 %v116
    %v197 = vunpack.c.l.b16 %v117
    %v198 = vunpack.c.l.b16 %v118
    %v199 = vunpack.c.l.b16 %v119
    %v200 = vunpack.c.l.b16 %v120
    %v201 = vunpack.c.l.b16 %v121
    %v202 = vunpack.c.l.b16 %v122
    %v203 = vpack.c.b16 %v188, %v187
    %v204 = vpack.c.b16 %v190, %v189
    %v205 = vpack.c.b16 %v192, %v191
    %v206 = vpack.c.b16 %v194, %v193
    %v207 = vpack.c.b16 %v196, %v195
    %v208 = vpack.c.b16 %v198, %v197
    %v209 = vpack.c.b16 %v200, %v199
    %v210 = vpack.c.b16 %v202, %v201
    %219 = vmatprep.subr.bf16.mxu0 0
    %220 = vmatpush1.bf16.msra.mxu0 %v203
    %221 = vmatprep.subr.bf16.mxu0 0
    %222 = vmatpush1.bf16.msra.mxu0 %v204
    %223 = vmatprep.subr.bf16.mxu0 0
    %224 = vmatpush1.bf16.msra.mxu0 %v205
    %225 = vmatprep.subr.bf16.mxu0 0
    %226 = vmatpush1.bf16.msra.mxu0 %v206
    %227 = vmatprep.subr.bf16.mxu0 0
    %228 = vmatpush1.bf16.msra.mxu0 %v207
    %229 = vmatprep.subr.bf16.mxu0 0
    %230 = vmatpush1.bf16.msra.mxu0 %v208
    %231 = vmatprep.subr.bf16.mxu0 0
    %232 = vmatpush1.bf16.msra.mxu0 %v209
    %233 = vmatprep.subr.bf16.mxu0 0
    %234 = vmatpush1.bf16.msra.mxu0 %v210
    %235 = vmatprep.subr.bf16.mxu0 0
    %236 = vmatpush1.bf16.msra.mxu0 0
    %237 = vmatprep.subr.bf16.mxu0 0
    %238 = vmatpush1.bf16.msra.mxu0 0
    %239 = vmatprep.subr.bf16.mxu0 0
    %240 = vmatpush1.bf16.msra.mxu0 0
    %241 = vmatprep.subr.bf16.mxu0 0
    %242 = vmatpush1.bf16.msra.mxu0 0
    %243 = vmatprep.subr.bf16.mxu0 0
    %244 = vmatpush1.bf16.msra.mxu0 0
    %245 = vmatprep.subr.bf16.mxu0 0
    %246 = vmatpush1.bf16.msra.mxu0 0
    %247 = vmatprep.subr.bf16.mxu0 0
    %248 = vmatpush1.bf16.msra.mxu0 0
    %249 = vmatprep.subr.bf16.mxu0 0
    %250 = vmatpush1.bf16.msra.mxu0 0
    %251 = vmatprep.mubr.bf16.mxu0 0
    %252 = vmatmul.mubr.bf16.gmra.mrb[0].mxu0 %v155
    %v253 = vpop.f32.mrb[0].mxu0
    %v254 = vadd.f32 0.0, %v253
    %v255 = vpop.f32.mrb[0].mxu0
    %v256 = vpop.f32.mrb[0].mxu0
    %v257 = vadd.f32 0.0, %v256
    %v258 = vpop.f32.mrb[0].mxu0
    %259 = vmatprep.mubr.bf16.mxu0 0
    %260 = vmatmul.mubr.bf16.gmra.mrb[0].mxu0 %v156
    %v261 = vpop.f32.mrb[0].mxu0
    %v262 = vadd.f32 0.0, %v261
    %v263 = vpop.f32.mrb[0].mxu0
    %v264 = vpop.f32.mrb[0].mxu0
    %v265 = vadd.f32 0.0, %v264
    %v266 = vpop.f32.mrb[0].mxu0
    %267 = vmatprep.mubr.bf16.mxu0 0
    %268 = vmatmul.mubr.bf16.gmra.mrb[0].mxu0 %v157
    %v269 = vpop.f32.mrb[0].mxu0
    %v270 = vadd.f32 0.0, %v269
    %v271 = vpop.f32.mrb[0].mxu0
    %v272 = vpop.f32.mrb[0].mxu0
    %v273 = vadd.f32 0.0, %v272
    %v274 = vpop.f32.mrb[0].mxu0
    %275 = vmatprep.mubr.bf16.mxu0 0
    %276 = vmatmul.mubr.bf16.gmra.mrb[0].mxu0 %v158
    %v277 = vpop.f32.mrb[0].mxu0
    %v278 = vadd.f32 0.0, %v277
    %v279 = vpop.f32.mrb[0].mxu0
    %v280 = vpop.f32.mrb[0].mxu0
    %v281 = vadd.f32 0.0, %v280
    %v282 = vpop.f32.mrb[0].mxu0
    %283 = vmatprep.mubr.bf16.mxu0 0
    %284 = vmatmul.mubr.bf16.gmra.mrb[0].mxu0 %v159
    %v285 = vpop.f32.mrb[0].mxu0
    %v286 = vadd.f32 0.0, %v285
    %v287 = vpop.f32.mrb[0].mxu0
    %v288 = vpop.f32.mrb[0].mxu0
    %v289 = vadd.f32 0.0, %v288
    %v290 = vpop.f32.mrb[0].mxu0
    %291 = vmatprep.mubr.bf16.mxu0 0
    %292 = vmatmul.mubr.bf16.gmra.mrb[0].mxu0 %v160
    %v293 = vpop.f32.mrb[0].mxu0
    %v294 = vadd.f32 0.0, %v293
    %v295 = vpop.f32.mrb[0].mxu0
    %v296 = vpop.f32.mrb[0].mxu0
    %v297 = vadd.f32 0.0, %v296
    %v298 = vpop.f32.mrb[0].mxu0
    %299 = vmatprep.mubr.bf16.mxu0 0
    %300 = vmatmul.mubr.bf16.gmra.mrb[0].mxu0 %v161
    %v301 = vpop.f32.mrb[0].mxu0
    %v302 = vadd.f32 0.0, %v301
    %v303 = vpop.f32.mrb[0].mxu0
    %v304 = vpop.f32.mrb[0].mxu0
    %v305 = vadd.f32 0.0, %v304
    %v306 = vpop.f32.mrb[0].mxu0
    %307 = vmatprep.mubr.bf16.mxu0 0
    %308 = vmatmul.mubr.bf16.gmra.mrb[0].mxu0 %v162
    %v309 = vpop.f32.mrb[0].mxu0
    %v310 = vadd.f32 0.0, %v309
    %v311 = vpop.f32.mrb[0].mxu0
    %v312 = vpop.f32.mrb[0].mxu0
    %v313 = vadd.f32 0.0, %v312
    %v314 = vpop.f32.mrb[0].mxu0
    %315 = vdwg.mxu0
    %v316 = vadd.f32 %v75, %v254
    %v317 = vadd.f32 %v76, %v257
    %v318 = vadd.f32 %v77, %v262
    %v319 = vadd.f32 %v78, %v265
    %v320 = vadd.f32 %v79, %v270
    %v321 = vadd.f32 %v80, %v273
    %v322 = vadd.f32 %v81, %v278
    %v323 = vadd.f32 %v82, %v281
    %v324 = vadd.f32 %v83, %v286
    %v325 = vadd.f32 %v84, %v289
    %v326 = vadd.f32 %v85, %v294
    %v327 = vadd.f32 %v86, %v297
    %v328 = vadd.f32 %v87, %v302
    %v329 = vadd.f32 %v88, %v305
    %v330 = vadd.f32 %v89, %v310
    %v331 = vadd.f32 %v90, %v313
    %332 = vst [vmem:[#allocation2] sm:$0xff] %v316
    %333 = vst [vmem:[#allocation2 + $0x8] sm:$0xff] %v317
    %334 = vst [vmem:[#allocation2 + $0x10] sm:$0xff] %v318
    %335 = vst [vmem:[#allocation2 + $0x18] sm:$0xff] %v319
    %336 = vst [vmem:[#allocation2 + $0x20] sm:$0xff] %v320
    %337 = vst [vmem:[#allocation2 + $0x28] sm:$0xff] %v321
    %338 = vst [vmem:[#allocation2 + $0x30] sm:$0xff] %v322
    %339 = vst [vmem:[#allocation2 + $0x38] sm:$0xff] %v323
    %340 = vst [vmem:[#allocation2 + $0x40] sm:$0xff] %v324
    %341 = vst [vmem:[#allocation2 + $0x48] sm:$0xff] %v325
    %342 = vst [vmem:[#allocation2 + $0x50] sm:$0xff] %v326
    %343 = vst [vmem:[#allocation2 + $0x58] sm:$0xff] %v327
    %344 = vst [vmem:[#allocation2 + $0x60] sm:$0xff] %v328
    %345 = vst [vmem:[#allocation2 + $0x68] sm:$0xff] %v329
    %346 = vst [vmem:[#allocation2 + $0x70] sm:$0xff] %v330
    %347 = vst [vmem:[#allocation2 + $0x78] sm:$0xff] %v331
    // Predicated region
    $region42: #{graphsage_forward.2} parent=1 // pred_check
      %p348 = pneg %p55
    $region43: #{graphsage_forward.2} parent=1 // pred_check_branch
      %350 = sbr.rel (%p348) target = $region45
    $region44: #{graphsage_forward.2} parent=1 // pred_region
      %v351 = vld [vmem:[#allocation2] sm:$0xff]
      %v352 = vld [vmem:[#allocation2 + $0x8] sm:$0xff]
      %v353 = vld [vmem:[#allocation2 + $0x10] sm:$0xff]
      %v354 = vld [vmem:[#allocation2 + $0x18] sm:$0xff]
      %v355 = vld [vmem:[#allocation2 + $0x20] sm:$0xff]
      %v356 = vld [vmem:[#allocation2 + $0x28] sm:$0xff]
      %v357 = vld [vmem:[#allocation2 + $0x30] sm:$0xff]
      %v358 = vld [vmem:[#allocation2 + $0x38] sm:$0xff]
      %v359 = vld [vmem:[#allocation2 + $0x40] sm:$0xff]
      %v360 = vld [vmem:[#allocation2 + $0x48] sm:$0xff]
      %v361 = vld [vmem:[#allocation2 + $0x50] sm:$0xff]
      %v362 = vld [vmem:[#allocation2 + $0x58] sm:$0xff]
      %v363 = vld [vmem:[#allocation2 + $0x60] sm:$0xff]
      %v364 = vld [vmem:[#allocation2 + $0x68] sm:$0xff]
      %v365 = vld [vmem:[#allocation2 + $0x70] sm:$0xff]
      %v366 = vld [vmem:[#allocation2 + $0x78] sm:$0xff]
      %v367 = vld [vmem:[%s3] sm:$0xff]
      %v368 = vld [vmem:[%s3 + $0x8] sm:$0xff]
      %v369 = vld [vmem:[%s3 + $0x10] sm:$0xff]
      %v370 = vld [vmem:[%s3 + $0x18] sm:$0xff]
      %v371 = vld [vmem:[%s3 + $0x20] sm:$0xff]
      %v372 = vld [vmem:[%s3 + $0x28] sm:$0xff]
      %v373 = vld [vmem:[%s3 + $0x30] sm:$0xff]
      %v374 = vld [vmem:[%s3 + $0x38] sm:$0xff]
      %v375 = vld [vmem:[%s3 + $0x40] sm:$0xff]
      %v376 = vld [vmem:[%s3 + $0x48] sm:$0xff]
      %v377 = vld [vmem:[%s3 + $0x50] sm:$0xff]
      %v378 = vld [vmem:[%s3 + $0x58] sm:$0xff]
      %v379 = vld [vmem:[%s3 + $0x60] sm:$0xff]
      %v380 = vld [vmem:[%s3 + $0x68] sm:$0xff]
      %v381 = vld [vmem:[%s3 + $0x70] sm:$0xff]
      %v382 = vld [vmem:[%s3 + $0x78] sm:$0xff]
      %384 = vset.pattern.permute.xlu0 0
      %385 = vperm.xlu0 %384, %v367
      %v386 = vpop.permute.xlu0 %385
      %389 = vset.pattern.permute.xlu0 0
      %390 = vperm.xlu0 %389, %v368
      %v391 = vpop.permute.xlu0 %390
      %394 = vset.pattern.permute.xlu0 0
      %395 = vperm.xlu0 %394, %v369
      %v396 = vpop.permute.xlu0 %395
      %399 = vset.pattern.permute.xlu0 0
      %400 = vperm.xlu0 %399, %v370
      %v401 = vpop.permute.xlu0 %400
      %404 = vset.pattern.permute.xlu0 0
      %405 = vperm.xlu0 %404, %v371
      %v406 = vpop.permute.xlu0 %405
      %409 = vset.pattern.permute.xlu0 0
      %410 = vperm.xlu0 %409, %v372
      %v411 = vpop.permute.xlu0 %410
      %414 = vset.pattern.permute.xlu0 0
      %415 = vperm.xlu0 %414, %v373
      %v416 = vpop.permute.xlu0 %415
      %419 = vset.pattern.permute.xlu0 0
      %420 = vperm.xlu0 %419, %v374
      %v421 = vpop.permute.xlu0 %420
      %424 = vset.pattern.permute.xlu0 0
      %425 = vperm.xlu0 %424, %v375
      %v426 = vpop.permute.xlu0 %425
      %429 = vset.pattern.permute.xlu0 0
      %430 = vperm.xlu0 %429, %v376
      %v431 = vpop.permute.xlu0 %430
      %434 = vset.pattern.permute.xlu0 0
      %435 = vperm.xlu0 %434, %v377
      %v436 = vpop.permute.xlu0 %435
      %439 = vset.pattern.permute.xlu0 0
      %440 = vperm.xlu0 %439, %v378
      %v441 = vpop.permute.xlu0 %440
      %444 = vset.pattern.permute.xlu0 0
      %445 = vperm.xlu0 %444, %v379
      %v446 = vpop.permute.xlu0 %445
      %449 = vset.pattern.permute.xlu0 0
      %450 = vperm.xlu0 %449, %v380
      %v451 = vpop.permute.xlu0 %450
      %454 = vset.pattern.permute.xlu0 0
      %455 = vperm.xlu0 %454, %v381
      %v456 = vpop.permute.xlu0 %455
      %459 = vset.pattern.permute.xlu0 0
      %460 = vperm.xlu0 %459, %v382
      %v461 = vpop.permute.xlu0 %460
      %v463 = vmul.f32 %v351, %v386
      %v464 = vmul.f32 %v352, %v391
      %v465 = vmul.f32 %v353, %v396
      %v466 = vmul.f32 %v354, %v401
      %v467 = vmul.f32 %v355, %v406
      %v468 = vmul.f32 %v356, %v411
      %v469 = vmul.f32 %v357, %v416
      %v470 = vmul.f32 %v358, %v421
      %v471 = vmul.f32 %v359, %v426
      %v472 = vmul.f32 %v360, %v431
      %v473 = vmul.f32 %v361, %v436
      %v474 = vmul.f32 %v362, %v441
      %v475 = vmul.f32 %v363, %v446
      %v476 = vmul.f32 %v364, %v451
      %v477 = vmul.f32 %v365, %v456
      %v478 = vmul.f32 %v366, %v461
      %v479 = vld [vmem:[#allocation3] sm:$0xff]
      %v480 = vld [vmem:[#allocation3 + $0x8] sm:$0xff]
      %v481 = vld [vmem:[#allocation3 + $0x10] sm:$0xff]
      %v482 = vld [vmem:[#allocation3 + $0x18] sm:$0xff]
      %v483 = vld [vmem:[#allocation3 + $0x20] sm:$0xff]
      %v484 = vld [vmem:[#allocation3 + $0x28] sm:$0xff]
      %v485 = vld [vmem:[#allocation3 + $0x30] sm:$0xff]
      %v486 = vld [vmem:[#allocation3 + $0x38] sm:$0xff]
      %v487 = vld [vmem:[#allocation3 + $0x40] sm:$0xff]
      %v488 = vld [vmem:[#allocation3 + $0x48] sm:$0xff]
      %v489 = vld [vmem:[#allocation3 + $0x50] sm:$0xff]
      %v490 = vld [vmem:[#allocation3 + $0x58] sm:$0xff]
      %v491 = vld [vmem:[#allocation3 + $0x60] sm:$0xff]
      %v492 = vld [vmem:[#allocation3 + $0x68] sm:$0xff]
      %v493 = vld [vmem:[#allocation3 + $0x70] sm:$0xff]
      %v494 = vld [vmem:[#allocation3 + $0x78] sm:$0xff]
      %v495 = vld [vmem:[%s2] sm:$0xf]
      %v496 = vld [vmem:[%s2 + $0x4] sm:$0xf]
      %v497 = vld [vmem:[%s2 + $0x8] sm:$0xf]
      %v498 = vld [vmem:[%s2 + $0xc] sm:$0xf]
      %v499 = vld [vmem:[%s2 + $0x10] sm:$0xf]
      %v500 = vld [vmem:[%s2 + $0x14] sm:$0xf]
      %v501 = vld [vmem:[%s2 + $0x18] sm:$0xf]
      %v502 = vld [vmem:[%s2 + $0x1c] sm:$0xf]
      %v503 = vld [vmem:[%s2 + $0x20] sm:$0xf]
      %v504 = vld [vmem:[%s2 + $0x24] sm:$0xf]
      %v505 = vld [vmem:[%s2 + $0x28] sm:$0xf]
      %v506 = vld [vmem:[%s2 + $0x2c] sm:$0xf]
      %v507 = vld [vmem:[%s2 + $0x30] sm:$0xf]
      %v508 = vld [vmem:[%s2 + $0x34] sm:$0xf]
      %v509 = vld [vmem:[%s2 + $0x38] sm:$0xf]
      %v510 = vld [vmem:[%s2 + $0x3c] sm:$0xf]
      %v511 = vunpack.c.l.bf16 %v495
      %v512 = vunpack.c.l.bf16 %v496
      %v513 = vunpack.c.l.bf16 %v497
      %v514 = vunpack.c.l.bf16 %v498
      %v515 = vunpack.c.l.bf16 %v499
      %v516 = vunpack.c.l.bf16 %v500
      %v517 = vunpack.c.l.bf16 %v501
      %v518 = vunpack.c.l.bf16 %v502
      %v519 = vunpack.c.l.bf16 %v503
      %v520 = vunpack.c.l.bf16 %v504
      %v521 = vunpack.c.l.bf16 %v505
      %v522 = vunpack.c.l.bf16 %v506
      %v523 = vunpack.c.l.bf16 %v507
      %v524 = vunpack.c.l.bf16 %v508
      %v525 = vunpack.c.l.bf16 %v509
      %v526 = vunpack.c.l.bf16 %v510
      %v527 = vld [vmem:[#allocation5] sm:$0xff]
      %v528 = vld [vmem:[#allocation5 + $0x8] sm:$0xff]
      %v529 = vld [vmem:[#allocation5 + $0x10] sm:$0xff]
      %v530 = vld [vmem:[#allocation5 + $0x18] sm:$0xff]
      %v531 = vld [vmem:[#allocation5 + $0x20] sm:$0xff]
      %v532 = vld [vmem:[#allocation5 + $0x28] sm:$0xff]
      %v533 = vld [vmem:[#allocation5 + $0x30] sm:$0xff]
      %v534 = vld [vmem:[#allocation5 + $0x38] sm:$0xff]
      %v535 = vld [vmem:[#allocation5 + $0x40] sm:$0xff]
      %v536 = vld [vmem:[#allocation5 + $0x48] sm:$0xff]
      %v537 = vld [vmem:[#allocation5 + $0x50] sm:$0xff]
      %v538 = vld [vmem:[#allocation5 + $0x58] sm:$0xff]
      %v539 = vld [vmem:[#allocation5 + $0x60] sm:$0xff]
      %v540 = vld [vmem:[#allocation5 + $0x68] sm:$0xff]
      %v541 = vld [vmem:[#allocation5 + $0x70] sm:$0xff]
      %v542 = vld [vmem:[#allocation5 + $0x78] sm:$0xff]
      %543 = vmatprep.subr.mxu0 0.0
      %544 = vmatpush1.msra.mxu0 %v527
      %545 = vmatprep.subr.mxu0 0.0
      %546 = vmatpush1.msra.mxu0 %v528
      %547 = vmatprep.subr.mxu0 0.0
      %548 = vmatpush1.msra.mxu0 %v529
      %549 = vmatprep.subr.mxu0 0.0
      %550 = vmatpush1.msra.mxu0 %v530
      %551 = vmatprep.subr.mxu0 0.0
      %552 = vmatpush1.msra.mxu0 %v531
      %553 = vmatprep.subr.mxu0 0.0
      %554 = vmatpush1.msra.mxu0 %v532
      %555 = vmatprep.subr.mxu0 0.0
      %556 = vmatpush1.msra.mxu0 %v533
      %557 = vmatprep.subr.mxu0 0.0
      %558 = vmatpush1.msra.mxu0 %v534
      %559 = vmatprep.subr.mxu0 0.0
      %560 = vmatpush1.msra.mxu0 %v535
      %561 = vmatprep.subr.mxu0 0.0
      %562 = vmatpush1.msra.mxu0 %v536
      %563 = vmatprep.subr.mxu0 0.0
      %564 = vmatpush1.msra.mxu0 %v537
      %565 = vmatprep.subr.mxu0 0.0
      %566 = vmatpush1.msra.mxu0 %v538
      %567 = vmatprep.subr.mxu0 0.0
      %568 = vmatpush1.msra.mxu0 %v539
      %569 = vmatprep.subr.mxu0 0.0
      %570 = vmatpush1.msra.mxu0 %v540
      %571 = vmatprep.subr.mxu0 0.0
      %572 = vmatpush1.msra.mxu0 %v541
      %573 = vmatprep.subr.mxu0 0.0
      %574 = vmatpush1.msra.mxu0 %v542
      %575 = vmatprep.subr.mxu0 0.0
      %576 = vmatpush1.msra.mxu0 0.0
      %577 = vmatprep.subr.mxu0 0.0
      %578 = vmatpush1.msra.mxu0 0.0
      %579 = vmatprep.subr.mxu0 0.0
      %580 = vmatpush1.msra.mxu0 0.0
      %581 = vmatprep.subr.mxu0 0.0
      %582 = vmatpush1.msra.mxu0 0.0
      %583 = vmatprep.subr.mxu0 0.0
      %584 = vmatpush1.msra.mxu0 0.0
      %585 = vmatprep.subr.mxu0 0.0
      %586 = vmatpush1.msra.mxu0 0.0
      %587 = vmatprep.subr.mxu0 0.0
      %588 = vmatpush1.msra.mxu0 0.0
      %589 = vmatprep.subr.mxu0 0.0
      %590 = vmatpush1.msra.mxu0 0.0
      %591 = vmatprep.subr.mxu0 0.0
      %592 = vmatpush1.msra.mxu0 0.0
      %593 = vmatprep.subr.mxu0 0.0
      %594 = vmatpush1.msra.mxu0 0.0
      %595 = vmatprep.subr.mxu0 0.0
      %596 = vmatpush1.msra.mxu0 0.0
      %597 = vmatprep.subr.mxu0 0.0
      %598 = vmatpush1.msra.mxu0 0.0
      %599 = vmatprep.subr.mxu0 0.0
      %600 = vmatpush1.msra.mxu0 0.0
      %601 = vmatprep.subr.mxu0 0.0
      %602 = vmatpush1.msra.mxu0 0.0
      %603 = vmatprep.subr.mxu0 0.0
      %604 = vmatpush1.msra.mxu0 0.0
      %605 = vmatprep.subr.mxu0 0.0
      %606 = vmatpush1.msra.mxu0 0.0
      %607 = vmatprep.mubr.f32.mxu0 0.0
      %608 = vmatmul.mubr.f32.gmra.mrb[0].mxu0 %v511
      %v609 = vpop.f32.mrb[0].mxu0
      %v610 = vadd.f32 0.0, %v609
      %v611 = vpop.f32.mrb[0].mxu0
      %612 = vmatprep.mubr.f32.mxu0 0.0
      %613 = vmatmul.mubr.f32.gmra.mrb[0].mxu0 %v512
      %v614 = vpop.f32.mrb[0].mxu0
      %v615 = vadd.f32 0.0, %v614
      %v616 = vpop.f32.mrb[0].mxu0
      %617 = vmatprep.mubr.f32.mxu0 0.0
      %618 = vmatmul.mubr.f32.gmra.mrb[0].mxu0 %v513
      %v619 = vpop.f32.mrb[0].mxu0
      %v620 = vadd.f32 0.0, %v619
      %v621 = vpop.f32.mrb[0].mxu0
      %622 = vmatprep.mubr.f32.mxu0 0.0
      %623 = vmatmul.mubr.f32.gmra.mrb[0].mxu0 %v514
      %v624 = vpop.f32.mrb[0].mxu0
      %v625 = vadd.f32 0.0, %v624
      %v626 = vpop.f32.mrb[0].mxu0
      %627 = vmatprep.mubr.f32.mxu0 0.0
      %628 = vmatmul.mubr.f32.gmra.mrb[0].mxu0 %v515
      %v629 = vpop.f32.mrb[0].mxu0
      %v630 = vadd.f32 0.0, %v629
      %v631 = vpop.f32.mrb[0].mxu0
      %632 = vmatprep.mubr.f32.mxu0 0.0
      %633 = vmatmul.mubr.f32.gmra.mrb[0].mxu0 %v516
      %v634 = vpop.f32.mrb[0].mxu0
      %v635 = vadd.f32 0.0, %v634
      %v636 = vpop.f32.mrb[0].mxu0
      %637 = vmatprep.mubr.f32.mxu0 0.0
      %638 = vmatmul.mubr.f32.gmra.mrb[0].mxu0 %v517
      %v639 = vpop.f32.mrb[0].mxu0
      %v640 = vadd.f32 0.0, %v639
      %v641 = vpop.f32.mrb[0].mxu0
      %642 = vmatprep.mubr.f32.mxu0 0.0
      %643 = vmatmul.mubr.f32.gmra.mrb[0].mxu0 %v518
      %v644 = vpop.f32.mrb[0].mxu0
      %v645 = vadd.f32 0.0, %v644
      %v646 = vpop.f32.mrb[0].mxu0
      %647 = vmatprep.mubr.f32.mxu0 0.0
      %648 = vmatmul.mubr.f32.gmra.mrb[0].mxu0 %v519
      %v649 = vpop.f32.mrb[0].mxu0
      %v650 = vadd.f32 0.0, %v649
      %v651 = vpop.f32.mrb[0].mxu0
      %652 = vmatprep.mubr.f32.mxu0 0.0
      %653 = vmatmul.mubr.f32.gmra.mrb[0].mxu0 %v520
      %v654 = vpop.f32.mrb[0].mxu0
      %v655 = vadd.f32 0.0, %v654
      %v656 = vpop.f32.mrb[0].mxu0
      %657 = vmatprep.mubr.f32.mxu0 0.0
      %658 = vmatmul.mubr.f32.gmra.mrb[0].mxu0 %v521
      %v659 = vpop.f32.mrb[0].mxu0
      %v660 = vadd.f32 0.0, %v659
      %v661 = vpop.f32.mrb[0].mxu0
      %662 = vmatprep.mubr.f32.mxu0 0.0
      %663 = vmatmul.mubr.f32.gmra.mrb[0].mxu0 %v522
      %v664 = vpop.f32.mrb[0].mxu0
      %v665 = vadd.f32 0.0, %v664
      %v666 = vpop.f32.mrb[0].mxu0
      %667 = vmatprep.mubr.f32.mxu0 0.0
      %668 = vmatmul.mubr.f32.gmra.mrb[0].mxu0 %v523
      %v669 = vpop.f32.mrb[0].mxu0
      %v670 = vadd.f32 0.0, %v669
      %v671 = vpop.f32.mrb[0].mxu0
      %672 = vmatprep.mubr.f32.mxu0 0.0
      %673 = vmatmul.mubr.f32.gmra.mrb[0].mxu0 %v524
      %v674 = vpop.f32.mrb[0].mxu0
      %v675 = vadd.f32 0.0, %v674
      %v676 = vpop.f32.mrb[0].mxu0
      %677 = vmatprep.mubr.f32.mxu0 0.0
      %678 = vmatmul.mubr.f32.gmra.mrb[0].mxu0 %v525
      %v679 = vpop.f32.mrb[0].mxu0
      %v680 = vadd.f32 0.0, %v679
      %v681 = vpop.f32.mrb[0].mxu0
      %682 = vmatprep.mubr.f32.mxu0 0.0
      %683 = vmatmul.mubr.f32.gmra.mrb[0].mxu0 %v526
      %v684 = vpop.f32.mrb[0].mxu0
      %v685 = vadd.f32 0.0, %v684
      %v686 = vpop.f32.mrb[0].mxu0
      %687 = vdwg.mxu0
      %688 = vmatprep.subr.mxu0 0.0
      %689 = vmatpush1.msra.mxu0 %v479
      %690 = vmatprep.subr.mxu0 0.0
      %691 = vmatpush1.msra.mxu0 %v480
      %692 = vmatprep.subr.mxu0 0.0
      %693 = vmatpush1.msra.mxu0 %v481
      %694 = vmatprep.subr.mxu0 0.0
      %695 = vmatpush1.msra.mxu0 %v482
      %696 = vmatprep.subr.mxu0 0.0
      %697 = vmatpush1.msra.mxu0 %v483
      %698 = vmatprep.subr.mxu0 0.0
      %699 = vmatpush1.msra.mxu0 %v484
      %700 = vmatprep.subr.mxu0 0.0
      %701 = vmatpush1.msra.mxu0 %v485
      %702 = vmatprep.subr.mxu0 0.0
      %703 = vmatpush1.msra.mxu0 %v486
      %704 = vmatprep.subr.mxu0 0.0
      %705 = vmatpush1.msra.mxu0 %v487
      %706 = vmatprep.subr.mxu0 0.0
      %707 = vmatpush1.msra.mxu0 %v488
      %708 = vmatprep.subr.mxu0 0.0
      %709 = vmatpush1.msra.mxu0 %v489
      %710 = vmatprep.subr.mxu0 0.0
      %711 = vmatpush1.msra.mxu0 %v490
      %712 = vmatprep.subr.mxu0 0.0
      %713 = vmatpush1.msra.mxu0 %v491
      %714 = vmatprep.subr.mxu0 0.0
      %715 = vmatpush1.msra.mxu0 %v492
      %716 = vmatprep.subr.mxu0 0.0
      %717 = vmatpush1.msra.mxu0 %v493
      %718 = vmatprep.subr.mxu0 0.0
      %719 = vmatpush1.msra.mxu0 %v494
      %720 = vmatprep.subr.mxu0 0.0
      %721 = vmatpush1.msra.mxu0 0.0
      %722 = vmatprep.subr.mxu0 0.0
      %723 = vmatpush1.msra.mxu0 0.0
      %724 = vmatprep.subr.mxu0 0.0
      %725 = vmatpush1.msra.mxu0 0.0
      %726 = vmatprep.subr.mxu0 0.0
      %727 = vmatpush1.msra.mxu0 0.0
      %728 = vmatprep.subr.mxu0 0.0
      %729 = vmatpush1.msra.mxu0 0.0
      %730 = vmatprep.subr.mxu0 0.0
      %731 = vmatpush1.msra.mxu0 0.0
      %732 = vmatprep.subr.mxu0 0.0
      %733 = vmatpush1.msra.mxu0 0.0
      %734 = vmatprep.subr.mxu0 0.0
      %735 = vmatpush1.msra.mxu0 0.0
      %736 = vmatprep.subr.mxu0 0.0
      %737 = vmatpush1.msra.mxu0 0.0
      %738 = vmatprep.subr.mxu0 0.0
      %739 = vmatpush1.msra.mxu0 0.0
      %740 = vmatprep.subr.mxu0 0.0
      %741 = vmatpush1.msra.mxu0 0.0
      %742 = vmatprep.subr.mxu0 0.0
      %743 = vmatpush1.msra.mxu0 0.0
      %744 = vmatprep.subr.mxu0 0.0
      %745 = vmatpush1.msra.mxu0 0.0
      %746 = vmatprep.subr.mxu0 0.0
      %747 = vmatpush1.msra.mxu0 0.0
      %748 = vmatprep.subr.mxu0 0.0
      %749 = vmatpush1.msra.mxu0 0.0
      %750 = vmatprep.subr.mxu0 0.0
      %751 = vmatpush1.msra.mxu0 0.0
      %752 = vmatprep.mubr.f32.mxu0 0.0
      %753 = vmatmul.mubr.f32.gmra.mrb[0].mxu0 %v463
      %v754 = vpop.f32.mrb[0].mxu0
      %v755 = vadd.f32 %v610, %v754
      %v756 = vpop.f32.mrb[0].mxu0
      %757 = vmatprep.mubr.f32.mxu0 0.0
      %758 = vmatmul.mubr.f32.gmra.mrb[0].mxu0 %v464
      %v759 = vpop.f32.mrb[0].mxu0
      %v760 = vadd.f32 %v615, %v759
      %v761 = vpop.f32.mrb[0].mxu0
      %762 = vmatprep.mubr.f32.mxu0 0.0
      %763 = vmatmul.mubr.f32.gmra.mrb[0].mxu0 %v465
      %v764 = vpop.f32.mrb[0].mxu0
      %v765 = vadd.f32 %v620, %v764
      %v766 = vpop.f32.mrb[0].mxu0
      %767 = vmatprep.mubr.f32.mxu0 0.0
      %768 = vmatmul.mubr.f32.gmra.mrb[0].mxu0 %v466
      %v769 = vpop.f32.mrb[0].mxu0
      %v770 = vadd.f32 %v625, %v769
      %v771 = vpop.f32.mrb[0].mxu0
      %772 = vmatprep.mubr.f32.mxu0 0.0
      %773 = vmatmul.mubr.f32.gmra.mrb[0].mxu0 %v467
      %v774 = vpop.f32.mrb[0].mxu0
      %v775 = vadd.f32 %v630, %v774
      %v776 = vpop.f32.mrb[0].mxu0
      %777 = vmatprep.mubr.f32.mxu0 0.0
      %778 = vmatmul.mubr.f32.gmra.mrb[0].mxu0 %v468
      %v779 = vpop.f32.mrb[0].mxu0
      %v780 = vadd.f32 %v635, %v779
      %v781 = vpop.f32.mrb[0].mxu0
      %782 = vmatprep.mubr.f32.mxu0 0.0
      %783 = vmatmul.mubr.f32.gmra.mrb[0].mxu0 %v469
      %v784 = vpop.f32.mrb[0].mxu0
      %v785 = vadd.f32 %v640, %v784
      %v786 = vpop.f32.mrb[0].mxu0
      %787 = vmatprep.mubr.f32.mxu0 0.0
      %788 = vmatmul.mubr.f32.gmra.mrb[0].mxu0 %v470
      %v789 = vpop.f32.mrb[0].mxu0
      %v790 = vadd.f32 %v645, %v789
      %v791 = vpop.f32.mrb[0].mxu0
      %792 = vmatprep.mubr.f32.mxu0 0.0
      %793 = vmatmul.mubr.f32.gmra.mrb[0].mxu0 %v471
      %v794 = vpop.f32.mrb[0].mxu0
      %v795 = vadd.f32 %v650, %v794
      %v796 = vpop.f32.mrb[0].mxu0
      %797 = vmatprep.mubr.f32.mxu0 0.0
      %798 = vmatmul.mubr.f32.gmra.mrb[0].mxu0 %v472
      %v799 = vpop.f32.mrb[0].mxu0
      %v800 = vadd.f32 %v655, %v799
      %v801 = vpop.f32.mrb[0].mxu0
      %802 = vmatprep.mubr.f32.mxu0 0.0
      %803 = vmatmul.mubr.f32.gmra.mrb[0].mxu0 %v473
      %v804 = vpop.f32.mrb[0].mxu0
      %v805 = vadd.f32 %v660, %v804
      %v806 = vpop.f32.mrb[0].mxu0
      %807 = vmatprep.mubr.f32.mxu0 0.0
      %808 = vmatmul.mubr.f32.gmra.mrb[0].mxu0 %v474
      %v809 = vpop.f32.mrb[0].mxu0
      %v810 = vadd.f32 %v665, %v809
      %v811 = vpop.f32.mrb[0].mxu0
      %812 = vmatprep.mubr.f32.mxu0 0.0
      %813 = vmatmul.mubr.f32.gmra.mrb[0].mxu0 %v475
      %v814 = vpop.f32.mrb[0].mxu0
      %v815 = vadd.f32 %v670, %v814
      %v816 = vpop.f32.mrb[0].mxu0
      %817 = vmatprep.mubr.f32.mxu0 0.0
      %818 = vmatmul.mubr.f32.gmra.mrb[0].mxu0 %v476
      %v819 = vpop.f32.mrb[0].mxu0
      %v820 = vadd.f32 %v675, %v819
      %v821 = vpop.f32.mrb[0].mxu0
      %822 = vmatprep.mubr.f32.mxu0 0.0
      %823 = vmatmul.mubr.f32.gmra.mrb[0].mxu0 %v477
      %v824 = vpop.f32.mrb[0].mxu0
      %v825 = vadd.f32 %v680, %v824
      %v826 = vpop.f32.mrb[0].mxu0
      %827 = vmatprep.mubr.f32.mxu0 0.0
      %828 = vmatmul.mubr.f32.gmra.mrb[0].mxu0 %v478
      %v829 = vpop.f32.mrb[0].mxu0
      %v830 = vadd.f32 %v685, %v829
      %v831 = vpop.f32.mrb[0].mxu0
      %832 = vdwg.mxu0
      %v833 = vld [vmem:[%s6] sm:$0x1]
      %v835 = vlaneseq
      %v836 = vshrl.u32 %v835, 7
      %v837 = vsub.s32 0, %v836
      %v838 = vrot.slane %v833, %v837
      %v840 = vadd.f32 %v755, %v838
      %v841 = vadd.f32 %v760, %v838
      %v842 = vadd.f32 %v765, %v838
      %v843 = vadd.f32 %v770, %v838
      %v844 = vadd.f32 %v775, %v838
      %v845 = vadd.f32 %v780, %v838
      %v846 = vadd.f32 %v785, %v838
      %v847 = vadd.f32 %v790, %v838
      %v848 = vadd.f32 %v795, %v838
      %v849 = vadd.f32 %v800, %v838
      %v850 = vadd.f32 %v805, %v838
      %v851 = vadd.f32 %v810, %v838
      %v852 = vadd.f32 %v815, %v838
      %v853 = vadd.f32 %v820, %v838
      %v854 = vadd.f32 %v825, %v838
      %v855 = vadd.f32 %v830, %v838
      %v856 = vmax.f32 %v840, 0.0
      %v857 = vmax.f32 %v841, 0.0
      %v858 = vmax.f32 %v842, 0.0
      %v859 = vmax.f32 %v843, 0.0
      %v860 = vmax.f32 %v844, 0.0
      %v861 = vmax.f32 %v845, 0.0
      %v862 = vmax.f32 %v846, 0.0
      %v863 = vmax.f32 %v847, 0.0
      %v864 = vmax.f32 %v848, 0.0
      %v865 = vmax.f32 %v849, 0.0
      %v866 = vmax.f32 %v850, 0.0
      %v867 = vmax.f32 %v851, 0.0
      %v868 = vmax.f32 %v852, 0.0
      %v869 = vmax.f32 %v853, 0.0
      %v870 = vmax.f32 %v854, 0.0
      %v871 = vmax.f32 %v855, 0.0
      %v872 = vpack.c.bf16 %v857, %v856
      %v873 = vpack.c.bf16 %v859, %v858
      %v874 = vpack.c.bf16 %v861, %v860
      %v875 = vpack.c.bf16 %v863, %v862
      %v876 = vpack.c.bf16 %v865, %v864
      %v877 = vpack.c.bf16 %v867, %v866
      %v878 = vpack.c.bf16 %v869, %v868
      %v879 = vpack.c.bf16 %v871, %v870
      %v888 = vunpack.c.l.b16 %v872
      %v889 = vunpack.c.h.b16 %v872
      %v890 = vunpack.c.l.b16 %v873
      %v891 = vunpack.c.h.b16 %v873
      %v892 = vunpack.c.l.b16 %v874
      %v893 = vunpack.c.h.b16 %v874
      %v894 = vunpack.c.l.b16 %v875
      %v895 = vunpack.c.h.b16 %v875
      %v896 = vunpack.c.l.b16 %v876
      %v897 = vunpack.c.h.b16 %v876
      %v898 = vunpack.c.l.b16 %v877
      %v899 = vunpack.c.h.b16 %v877
      %v900 = vunpack.c.l.b16 %v878
      %v901 = vunpack.c.h.b16 %v878
      %v902 = vunpack.c.l.b16 %v879
      %v903 = vunpack.c.h.b16 %v879
      %v904 = vpack.c.b16 %v888, %v888
      %v905 = vpack.c.b16 %v889, %v889
      %v906 = vpack.c.b16 %v890, %v890
      %v907 = vpack.c.b16 %v891, %v891
      %v908 = vpack.c.b16 %v892, %v892
      %v909 = vpack.c.b16 %v893, %v893
      %v910 = vpack.c.b16 %v894, %v894
      %v911 = vpack.c.b16 %v895, %v895
      %v912 = vpack.c.b16 %v896, %v896
      %v913 = vpack.c.b16 %v897, %v897
      %v914 = vpack.c.b16 %v898, %v898
      %v915 = vpack.c.b16 %v899, %v899
      %v916 = vpack.c.b16 %v900, %v900
      %v917 = vpack.c.b16 %v901, %v901
      %v918 = vpack.c.b16 %v902, %v902
      %v919 = vpack.c.b16 %v903, %v903
      %936 = vst [vmem:[%s7] sm:$0xf] %v904
      %937 = vst [vmem:[%s7 + $0x4] sm:$0xf] %v905
      %938 = vst [vmem:[%s7 + $0x8] sm:$0xf] %v906
      %939 = vst [vmem:[%s7 + $0xc] sm:$0xf] %v907
      %940 = vst [vmem:[%s7 + $0x10] sm:$0xf] %v908
      %941 = vst [vmem:[%s7 + $0x14] sm:$0xf] %v909
      %942 = vst [vmem:[%s7 + $0x18] sm:$0xf] %v910
      %943 = vst [vmem:[%s7 + $0x1c] sm:$0xf] %v911
      %944 = vst [vmem:[%s7 + $0x20] sm:$0xf] %v912
      %945 = vst [vmem:[%s7 + $0x24] sm:$0xf] %v913
      %946 = vst [vmem:[%s7 + $0x28] sm:$0xf] %v914
      %947 = vst [vmem:[%s7 + $0x2c] sm:$0xf] %v915
      %948 = vst [vmem:[%s7 + $0x30] sm:$0xf] %v916
      %949 = vst [vmem:[%s7 + $0x34] sm:$0xf] %v917
      %950 = vst [vmem:[%s7 + $0x38] sm:$0xf] %v918
      %951 = vst [vmem:[%s7 + $0x3c] sm:$0xf] %v919
    $region45: #{graphsage_forward.2} parent=1 // pred_fallthru
      _
    // Predicated region
    $region46: #{graphsage_forward.2} parent=1 // pred_check
      _
    $region47: #{graphsage_forward.2} parent=1 // pred_check_branch
      %953 = sbr.rel (0) target = $region49
    $region48: #{graphsage_forward.2} parent=1 // pred_region
      _
    $region49: #{graphsage_forward.2} parent=1 // pred_fallthru
      _
    // Predicated region
    $region50: #{graphsage_forward.2} parent=1 // pred_check
      _
    $region51: #{graphsage_forward.2} parent=1 // pred_check_branch
      %955 = sbr.rel (0) target = $region53
    $region52: #{graphsage_forward.2} parent=1 // pred_region
      _
    $region53: #{graphsage_forward.2} parent=1 // pred_fallthru
      _
    %956 = vsyncpa [#allocation4], 1
    %957 = vsyncpa [#allocation6], 1

// kernel: graphsage_forward.3
$region0: #{graphsage_forward.3}
  #allocation0 [shape = 'u32[]', space=smem, size = 0x4, offset = 0x4, fixed_abs, tag = 'smem constant byte address 0x4 - core index']
  #allocation1 [shape = 'u32[144,128]{1,0:T(1,128)}', space=vmem, size = 0x12000, scoped, tag = 'internal scratch']
  #allocation2 [shape = 'f32[128,128]{1,0:T(8,128)}', space=vmem, size = 0x10000, scoped, tag = 'scratch operand']
  %s0 = inlined_call_operand.vmem [shape: bf16[128,128], index: 0, kind: input, shape index: {}]
  %s1 = inlined_call_operand.vmem [shape: bf16[128,128], index: 1, kind: input, shape index: {}, may-alias: {1,2}]
  %s2 = inlined_call_operand.vmem [shape: bf16[128,128], index: 2, kind: input, shape index: {}, may-alias: {1,2}]
  %s3 = inlined_call_operand.vmem [shape: f32[128,1], index: 3, kind: input, shape index: {}]
  %s4 = inlined_call_operand.vmem [shape: f32[2,128], index: 4, kind: input, shape index: {}]
  %s5 = inlined_call_operand.vmem [shape: f32[128,128], index: 5, kind: input, shape index: {}]
  %s6 = inlined_call_operand.vmem [shape: f32[128,128], index: 6, kind: input, shape index: {}]
  %s7 = inlined_call_operand.vmem [shape: f32[1,128], index: 7, kind: input, shape index: {}]
  %s8 = inlined_call_operand.vmem [shape: f32[1,2,128], index: 8, kind: output, shape index: {}]
  %s9 = sld [smem:[#allocation0]]
  $region50: #{graphsage_forward.3} parent=0
    _
  %s11 = ssub.s32 1, %s9
  %s12 = scalar_select 0, %s11, %s9
  // Predicated region
  $region2: #{graphsage_forward.3} parent=0 // pred_check
    _
  $region3: #{graphsage_forward.3} parent=0 // pred_check_branch
    %14 = sbr.rel (0) target = $region5
  $region4: #{graphsage_forward.3} parent=0 // pred_region
    _
  $region5: #{graphsage_forward.3} parent=0 // pred_fallthru
    _
  // Predicated region
  $region6: #{graphsage_forward.3} parent=0 // pred_check
    _
  $region7: #{graphsage_forward.3} parent=0 // pred_check_branch
    %16 = sbr.rel (0) target = $region9
  $region8: #{graphsage_forward.3} parent=0 // pred_region
    _
  $region9: #{graphsage_forward.3} parent=0 // pred_fallthru
    _
  // Predicated region
  $region10: #{graphsage_forward.3} parent=0 // pred_check
    _
  $region11: #{graphsage_forward.3} parent=0 // pred_check_branch
    %18 = sbr.rel (0) target = $region13
  $region12: #{graphsage_forward.3} parent=0 // pred_region
    _
  $region13: #{graphsage_forward.3} parent=0 // pred_fallthru
    _
  // Predicated region
  $region14: #{graphsage_forward.3} parent=0 // pred_check
    _
  $region15: #{graphsage_forward.3} parent=0 // pred_check_branch
    %20 = sbr.rel (0) target = $region17
  $region16: #{graphsage_forward.3} parent=0 // pred_region
    _
  $region17: #{graphsage_forward.3} parent=0 // pred_fallthru
    _
  // Predicated region
  $region18: #{graphsage_forward.3} parent=0 // pred_check
    _
  $region19: #{graphsage_forward.3} parent=0 // pred_check_branch
    %22 = sbr.rel (0) target = $region21
  $region20: #{graphsage_forward.3} parent=0 // pred_region
    _
  $region21: #{graphsage_forward.3} parent=0 // pred_fallthru
    _
  // Predicated region
  $region22: #{graphsage_forward.3} parent=0 // pred_check
    _
  $region23: #{graphsage_forward.3} parent=0 // pred_check_branch
    %24 = sbr.rel (0) target = $region25
  $region24: #{graphsage_forward.3} parent=0 // pred_region
    _
  $region25: #{graphsage_forward.3} parent=0 // pred_fallthru
    _
  // Predicated region
  $region26: #{graphsage_forward.3} parent=0 // pred_check
    _
  $region27: #{graphsage_forward.3} parent=0 // pred_check_branch
    %26 = sbr.rel (0) target = $region29
  $region28: #{graphsage_forward.3} parent=0 // pred_region
    _
  $region29: #{graphsage_forward.3} parent=0 // pred_fallthru
    _
  // Predicated region
  $region30: #{graphsage_forward.3} parent=0 // pred_check
    _
  $region31: #{graphsage_forward.3} parent=0 // pred_check_branch
    %28 = sbr.rel (0) target = $region33
  $region32: #{graphsage_forward.3} parent=0 // pred_region
    _
  $region33: #{graphsage_forward.3} parent=0 // pred_fallthru
    _
  %p30 = scmp.eq.s32.totalorder 0, 0
  // Predicated region
  $region34: #{graphsage_forward.3} parent=0 // pred_check
    %p31 = pneg %p30
  $region35: #{graphsage_forward.3} parent=0 // pred_check_branch
    %33 = sbr.rel (%p31) target = $region37
  $region36: #{graphsage_forward.3} parent=0 // pred_region
    %34 = vst [vmem:[#allocation2] sm:$0xff] 0.0
    %35 = vst [vmem:[#allocation2 + $0x8] sm:$0xff] 0.0
    %36 = vst [vmem:[#allocation2 + $0x10] sm:$0xff] 0.0
    %37 = vst [vmem:[#allocation2 + $0x18] sm:$0xff] 0.0
    %38 = vst [vmem:[#allocation2 + $0x20] sm:$0xff] 0.0
    %39 = vst [vmem:[#allocation2 + $0x28] sm:$0xff] 0.0
    %40 = vst [vmem:[#allocation2 + $0x30] sm:$0xff] 0.0
    %41 = vst [vmem:[#allocation2 + $0x38] sm:$0xff] 0.0
    %42 = vst [vmem:[#allocation2 + $0x40] sm:$0xff] 0.0
    %43 = vst [vmem:[#allocation2 + $0x48] sm:$0xff] 0.0
    %44 = vst [vmem:[#allocation2 + $0x50] sm:$0xff] 0.0
    %45 = vst [vmem:[#allocation2 + $0x58] sm:$0xff] 0.0
    %46 = vst [vmem:[#allocation2 + $0x60] sm:$0xff] 0.0
    %47 = vst [vmem:[#allocation2 + $0x68] sm:$0xff] 0.0
    %48 = vst [vmem:[#allocation2 + $0x70] sm:$0xff] 0.0
    %49 = vst [vmem:[#allocation2 + $0x78] sm:$0xff] 0.0
  $region37: #{graphsage_forward.3} parent=0 // pred_fallthru
    _
  %v50 = vld [vmem:[#allocation2] sm:$0xff]
  %v51 = vld [vmem:[#allocation2 + $0x8] sm:$0xff]
  %v52 = vld [vmem:[#allocation2 + $0x10] sm:$0xff]
  %v53 = vld [vmem:[#allocation2 + $0x18] sm:$0xff]
  %v54 = vld [vmem:[#allocation2 + $0x20] sm:$0xff]
  %v55 = vld [vmem:[#allocation2 + $0x28] sm:$0xff]
  %v56 = vld [vmem:[#allocation2 + $0x30] sm:$0xff]
  %v57 = vld [vmem:[#allocation2 + $0x38] sm:$0xff]
  %v58 = vld [vmem:[#allocation2 + $0x40] sm:$0xff]
  %v59 = vld [vmem:[#allocation2 + $0x48] sm:$0xff]
  %v60 = vld [vmem:[#allocation2 + $0x50] sm:$0xff]
  %v61 = vld [vmem:[#allocation2 + $0x58] sm:$0xff]
  %v62 = vld [vmem:[#allocation2 + $0x60] sm:$0xff]
  %v63 = vld [vmem:[#allocation2 + $0x68] sm:$0xff]
  %v64 = vld [vmem:[#allocation2 + $0x70] sm:$0xff]
  %v65 = vld [vmem:[#allocation2 + $0x78] sm:$0xff]
  %v66 = vld [vmem:[%s0] sm:$0xf]
  %v67 = vld [vmem:[%s0 + $0x4] sm:$0xf]
  %v68 = vld [vmem:[%s0 + $0x8] sm:$0xf]
  %v69 = vld [vmem:[%s0 + $0xc] sm:$0xf]
  %v70 = vld [vmem:[%s0 + $0x10] sm:$0xf]
  %v71 = vld [vmem:[%s0 + $0x14] sm:$0xf]
  %v72 = vld [vmem:[%s0 + $0x18] sm:$0xf]
  %v73 = vld [vmem:[%s0 + $0x1c] sm:$0xf]
  %v74 = vld [vmem:[%s0 + $0x20] sm:$0xf]
  %v75 = vld [vmem:[%s0 + $0x24] sm:$0xf]
  %v76 = vld [vmem:[%s0 + $0x28] sm:$0xf]
  %v77 = vld [vmem:[%s0 + $0x2c] sm:$0xf]
  %v78 = vld [vmem:[%s0 + $0x30] sm:$0xf]
  %v79 = vld [vmem:[%s0 + $0x34] sm:$0xf]
  %v80 = vld [vmem:[%s0 + $0x38] sm:$0xf]
  %v81 = vld [vmem:[%s0 + $0x3c] sm:$0xf]
  %v82 = vld [vmem:[%s1] sm:$0xf]
  %v83 = vld [vmem:[%s1 + $0x4] sm:$0xf]
  %v84 = vld [vmem:[%s1 + $0x8] sm:$0xf]
  %v85 = vld [vmem:[%s1 + $0xc] sm:$0xf]
  %v86 = vld [vmem:[%s1 + $0x10] sm:$0xf]
  %v87 = vld [vmem:[%s1 + $0x14] sm:$0xf]
  %v88 = vld [vmem:[%s1 + $0x18] sm:$0xf]
  %v89 = vld [vmem:[%s1 + $0x1c] sm:$0xf]
  %v90 = vld [vmem:[%s1 + $0x20] sm:$0xf]
  %v91 = vld [vmem:[%s1 + $0x24] sm:$0xf]
  %v92 = vld [vmem:[%s1 + $0x28] sm:$0xf]
  %v93 = vld [vmem:[%s1 + $0x2c] sm:$0xf]
  %v94 = vld [vmem:[%s1 + $0x30] sm:$0xf]
  %v95 = vld [vmem:[%s1 + $0x34] sm:$0xf]
  %v96 = vld [vmem:[%s1 + $0x38] sm:$0xf]
  %v97 = vld [vmem:[%s1 + $0x3c] sm:$0xf]
  %v114 = vunpack.c.l.b16 %v66
  %v115 = vunpack.c.l.b16 %v67
  %v116 = vunpack.c.l.b16 %v68
  %v117 = vunpack.c.l.b16 %v69
  %v118 = vunpack.c.l.b16 %v70
  %v119 = vunpack.c.l.b16 %v71
  %v120 = vunpack.c.l.b16 %v72
  %v121 = vunpack.c.l.b16 %v73
  %v122 = vunpack.c.l.b16 %v74
  %v123 = vunpack.c.l.b16 %v75
  %v124 = vunpack.c.l.b16 %v76
  %v125 = vunpack.c.l.b16 %v77
  %v126 = vunpack.c.l.b16 %v78
  %v127 = vunpack.c.l.b16 %v79
  %v128 = vunpack.c.l.b16 %v80
  %v129 = vunpack.c.l.b16 %v81
  %v130 = vpack.c.b16 %v115, %v114
  %v131 = vpack.c.b16 %v117, %v116
  %v132 = vpack.c.b16 %v119, %v118
  %v133 = vpack.c.b16 %v121, %v120
  %v134 = vpack.c.b16 %v123, %v122
  %v135 = vpack.c.b16 %v125, %v124
  %v136 = vpack.c.b16 %v127, %v126
  %v137 = vpack.c.b16 %v129, %v128
  %v162 = vunpack.c.l.b16 %v82
  %v163 = vunpack.c.l.b16 %v83
  %v164 = vunpack.c.l.b16 %v84
  %v165 = vunpack.c.l.b16 %v85
  %v166 = vunpack.c.l.b16 %v86
  %v167 = vunpack.c.l.b16 %v87
  %v168 = vunpack.c.l.b16 %v88
  %v169 = vunpack.c.l.b16 %v89
  %v170 = vunpack.c.l.b16 %v90
  %v171 = vunpack.c.l.b16 %v91
  %v172 = vunpack.c.l.b16 %v92
  %v173 = vunpack.c.l.b16 %v93
  %v174 = vunpack.c.l.b16 %v94
  %v175 = vunpack.c.l.b16 %v95
  %v176 = vunpack.c.l.b16 %v96
  %v177 = vunpack.c.l.b16 %v97
  %v178 = vpack.c.b16 %v163, %v162
  %v179 = vpack.c.b16 %v165, %v164
  %v180 = vpack.c.b16 %v167, %v166
  %v181 = vpack.c.b16 %v169, %v168
  %v182 = vpack.c.b16 %v171, %v170
  %v183 = vpack.c.b16 %v173, %v172
  %v184 = vpack.c.b16 %v175, %v174
  %v185 = vpack.c.b16 %v177, %v176
  %194 = vmatprep.subr.bf16.mxu0 0
  %195 = vmatpush1.bf16.msra.mxu0 %v178
  %196 = vmatprep.subr.bf16.mxu0 0
  %197 = vmatpush1.bf16.msra.mxu0 %v179
  %198 = vmatprep.subr.bf16.mxu0 0
  %199 = vmatpush1.bf16.msra.mxu0 %v180
  %200 = vmatprep.subr.bf16.mxu0 0
  %201 = vmatpush1.bf16.msra.mxu0 %v181
  %202 = vmatprep.subr.bf16.mxu0 0
  %203 = vmatpush1.bf16.msra.mxu0 %v182
  %204 = vmatprep.subr.bf16.mxu0 0
  %205 = vmatpush1.bf16.msra.mxu0 %v183
  %206 = vmatprep.subr.bf16.mxu0 0
  %207 = vmatpush1.bf16.msra.mxu0 %v184
  %208 = vmatprep.subr.bf16.mxu0 0
  %209 = vmatpush1.bf16.msra.mxu0 %v185
  %210 = vmatprep.subr.bf16.mxu0 0
  %211 = vmatpush1.bf16.msra.mxu0 0
  %212 = vmatprep.subr.bf16.mxu0 0
  %213 = vmatpush1.bf16.msra.mxu0 0
  %214 = vmatprep.subr.bf16.mxu0 0
  %215 = vmatpush1.bf16.msra.mxu0 0
  %216 = vmatprep.subr.bf16.mxu0 0
  %217 = vmatpush1.bf16.msra.mxu0 0
  %218 = vmatprep.subr.bf16.mxu0 0
  %219 = vmatpush1.bf16.msra.mxu0 0
  %220 = vmatprep.subr.bf16.mxu0 0
  %221 = vmatpush1.bf16.msra.mxu0 0
  %222 = vmatprep.subr.bf16.mxu0 0
  %223 = vmatpush1.bf16.msra.mxu0 0
  %224 = vmatprep.subr.bf16.mxu0 0
  %225 = vmatpush1.bf16.msra.mxu0 0
  %226 = vmatprep.mubr.bf16.mxu0 0
  %227 = vmatmul.mubr.bf16.gmra.mrb[0].mxu0 %v130
  %v228 = vpop.f32.mrb[0].mxu0
  %v229 = vadd.f32 0.0, %v228
  %v230 = vpop.f32.mrb[0].mxu0
  %v231 = vpop.f32.mrb[0].mxu0
  %v232 = vadd.f32 0.0, %v231
  %v233 = vpop.f32.mrb[0].mxu0
  %234 = vmatprep.mubr.bf16.mxu0 0
  %235 = vmatmul.mubr.bf16.gmra.mrb[0].mxu0 %v131
  %v236 = vpop.f32.mrb[0].mxu0
  %v237 = vadd.f32 0.0, %v236
  %v238 = vpop.f32.mrb[0].mxu0
  %v239 = vpop.f32.mrb[0].mxu0
  %v240 = vadd.f32 0.0, %v239
  %v241 = vpop.f32.mrb[0].mxu0
  %242 = vmatprep.mubr.bf16.mxu0 0
  %243 = vmatmul.mubr.bf16.gmra.mrb[0].mxu0 %v132
  %v244 = vpop.f32.mrb[0].mxu0
  %v245 = vadd.f32 0.0, %v244
  %v246 = vpop.f32.mrb[0].mxu0
  %v247 = vpop.f32.mrb[0].mxu0
  %v248 = vadd.f32 0.0, %v247
  %v249 = vpop.f32.mrb[0].mxu0
  %250 = vmatprep.mubr.bf16.mxu0 0
  %251 = vmatmul.mubr.bf16.gmra.mrb[0].mxu0 %v133
  %v252 = vpop.f32.mrb[0].mxu0
  %v253 = vadd.f32 0.0, %v252
  %v254 = vpop.f32.mrb[0].mxu0
  %v255 = vpop.f32.mrb[0].mxu0
  %v256 = vadd.f32 0.0, %v255
  %v257 = vpop.f32.mrb[0].mxu0
  %258 = vmatprep.mubr.bf16.mxu0 0
  %259 = vmatmul.mubr.bf16.gmra.mrb[0].mxu0 %v134
  %v260 = vpop.f32.mrb[0].mxu0
  %v261 = vadd.f32 0.0, %v260
  %v262 = vpop.f32.mrb[0].mxu0
  %v263 = vpop.f32.mrb[0].mxu0
  %v264 = vadd.f32 0.0, %v263
  %v265 = vpop.f32.mrb[0].mxu0
  %266 = vmatprep.mubr.bf16.mxu0 0
  %267 = vmatmul.mubr.bf16.gmra.mrb[0].mxu0 %v135
  %v268 = vpop.f32.mrb[0].mxu0
  %v269 = vadd.f32 0.0, %v268
  %v270 = vpop.f32.mrb[0].mxu0
  %v271 = vpop.f32.mrb[0].mxu0
  %v272 = vadd.f32 0.0, %v271
  %v273 = vpop.f32.mrb[0].mxu0
  %274 = vmatprep.mubr.bf16.mxu0 0
  %275 = vmatmul.mubr.bf16.gmra.mrb[0].mxu0 %v136
  %v276 = vpop.f32.mrb[0].mxu0
  %v277 = vadd.f32 0.0, %v276
  %v278 = vpop.f32.mrb[0].mxu0
  %v279 = vpop.f32.mrb[0].mxu0
  %v280 = vadd.f32 0.0, %v279
  %v281 = vpop.f32.mrb[0].mxu0
  %282 = vmatprep.mubr.bf16.mxu0 0
  %283 = vmatmul.mubr.bf16.gmra.mrb[0].mxu0 %v137
  %v284 = vpop.f32.mrb[0].mxu0
  %v285 = vadd.f32 0.0, %v284
  %v286 = vpop.f32.mrb[0].mxu0
  %v287 = vpop.f32.mrb[0].mxu0
  %v288 = vadd.f32 0.0, %v287
  %v289 = vpop.f32.mrb[0].mxu0
  %290 = vdwg.mxu0
  %v291 = vadd.f32 %v50, %v229
  %v292 = vadd.f32 %v51, %v232
  %v293 = vadd.f32 %v52, %v237
  %v294 = vadd.f32 %v53, %v240
  %v295 = vadd.f32 %v54, %v245
  %v296 = vadd.f32 %v55, %v248
  %v297 = vadd.f32 %v56, %v253
  %v298 = vadd.f32 %v57, %v256
  %v299 = vadd.f32 %v58, %v261
  %v300 = vadd.f32 %v59, %v264
  %v301 = vadd.f32 %v60, %v269
  %v302 = vadd.f32 %v61, %v272
  %v303 = vadd.f32 %v62, %v277
  %v304 = vadd.f32 %v63, %v280
  %v305 = vadd.f32 %v64, %v285
  %v306 = vadd.f32 %v65, %v288
  %307 = vst [vmem:[#allocation2] sm:$0xff] %v291
  %308 = vst [vmem:[#allocation2 + $0x8] sm:$0xff] %v292
  %309 = vst [vmem:[#allocation2 + $0x10] sm:$0xff] %v293
  %310 = vst [vmem:[#allocation2 + $0x18] sm:$0xff] %v294
  %311 = vst [vmem:[#allocation2 + $0x20] sm:$0xff] %v295
  %312 = vst [vmem:[#allocation2 + $0x28] sm:$0xff] %v296
  %313 = vst [vmem:[#allocation2 + $0x30] sm:$0xff] %v297
  %314 = vst [vmem:[#allocation2 + $0x38] sm:$0xff] %v298
  %315 = vst [vmem:[#allocation2 + $0x40] sm:$0xff] %v299
  %316 = vst [vmem:[#allocation2 + $0x48] sm:$0xff] %v300
  %317 = vst [vmem:[#allocation2 + $0x50] sm:$0xff] %v301
  %318 = vst [vmem:[#allocation2 + $0x58] sm:$0xff] %v302
  %319 = vst [vmem:[#allocation2 + $0x60] sm:$0xff] %v303
  %320 = vst [vmem:[#allocation2 + $0x68] sm:$0xff] %v304
  %321 = vst [vmem:[#allocation2 + $0x70] sm:$0xff] %v305
  %322 = vst [vmem:[#allocation2 + $0x78] sm:$0xff] %v306
  // Predicated region
  $region38: #{graphsage_forward.3} parent=0 // pred_check
    %p323 = pneg %p30
  $region39: #{graphsage_forward.3} parent=0 // pred_check_branch
    %325 = sbr.rel (%p323) target = $region41
  $region40: #{graphsage_forward.3} parent=0 // pred_region
    %v326 = vld [vmem:[#allocation2] sm:$0xff]
    %v327 = vld [vmem:[#allocation2 + $0x8] sm:$0xff]
    %v328 = vld [vmem:[#allocation2 + $0x10] sm:$0xff]
    %v329 = vld [vmem:[#allocation2 + $0x18] sm:$0xff]
    %v330 = vld [vmem:[#allocation2 + $0x20] sm:$0xff]
    %v331 = vld [vmem:[#allocation2 + $0x28] sm:$0xff]
    %v332 = vld [vmem:[#allocation2 + $0x30] sm:$0xff]
    %v333 = vld [vmem:[#allocation2 + $0x38] sm:$0xff]
    %v334 = vld [vmem:[#allocation2 + $0x40] sm:$0xff]
    %v335 = vld [vmem:[#allocation2 + $0x48] sm:$0xff]
    %v336 = vld [vmem:[#allocation2 + $0x50] sm:$0xff]
    %v337 = vld [vmem:[#allocation2 + $0x58] sm:$0xff]
    %v338 = vld [vmem:[#allocation2 + $0x60] sm:$0xff]
    %v339 = vld [vmem:[#allocation2 + $0x68] sm:$0xff]
    %v340 = vld [vmem:[#allocation2 + $0x70] sm:$0xff]
    %v341 = vld [vmem:[#allocation2 + $0x78] sm:$0xff]
    %v342 = vld [vmem:[%s3] sm:$0xff]
    %v343 = vld [vmem:[%s3 + $0x8] sm:$0xff]
    %v344 = vld [vmem:[%s3 + $0x10] sm:$0xff]
    %v345 = vld [vmem:[%s3 + $0x18] sm:$0xff]
    %v346 = vld [vmem:[%s3 + $0x20] sm:$0xff]
    %v347 = vld [vmem:[%s3 + $0x28] sm:$0xff]
    %v348 = vld [vmem:[%s3 + $0x30] sm:$0xff]
    %v349 = vld [vmem:[%s3 + $0x38] sm:$0xff]
    %v350 = vld [vmem:[%s3 + $0x40] sm:$0xff]
    %v351 = vld [vmem:[%s3 + $0x48] sm:$0xff]
    %v352 = vld [vmem:[%s3 + $0x50] sm:$0xff]
    %v353 = vld [vmem:[%s3 + $0x58] sm:$0xff]
    %v354 = vld [vmem:[%s3 + $0x60] sm:$0xff]
    %v355 = vld [vmem:[%s3 + $0x68] sm:$0xff]
    %v356 = vld [vmem:[%s3 + $0x70] sm:$0xff]
    %v357 = vld [vmem:[%s3 + $0x78] sm:$0xff]
    %359 = vset.pattern.permute.xlu0 0
    %360 = vperm.xlu0 %359, %v342
    %v361 = vpop.permute.xlu0 %360
    %364 = vset.pattern.permute.xlu0 0
    %365 = vperm.xlu0 %364, %v343
    %v366 = vpop.permute.xlu0 %365
    %369 = vset.pattern.permute.xlu0 0
    %370 = vperm.xlu0 %369, %v344
    %v371 = vpop.permute.xlu0 %370
    %374 = vset.pattern.permute.xlu0 0
    %375 = vperm.xlu0 %374, %v345
    %v376 = vpop.permute.xlu0 %375
    %379 = vset.pattern.permute.xlu0 0
    %380 = vperm.xlu0 %379, %v346
    %v381 = vpop.permute.xlu0 %380
    %384 = vset.pattern.permute.xlu0 0
    %385 = vperm.xlu0 %384, %v347
    %v386 = vpop.permute.xlu0 %385
    %389 = vset.pattern.permute.xlu0 0
    %390 = vperm.xlu0 %389, %v348
    %v391 = vpop.permute.xlu0 %390
    %394 = vset.pattern.permute.xlu0 0
    %395 = vperm.xlu0 %394, %v349
    %v396 = vpop.permute.xlu0 %395
    %399 = vset.pattern.permute.xlu0 0
    %400 = vperm.xlu0 %399, %v350
    %v401 = vpop.permute.xlu0 %400
    %404 = vset.pattern.permute.xlu0 0
    %405 = vperm.xlu0 %404, %v351
    %v406 = vpop.permute.xlu0 %405
    %409 = vset.pattern.permute.xlu0 0
    %410 = vperm.xlu0 %409, %v352
    %v411 = vpop.permute.xlu0 %410
    %414 = vset.pattern.permute.xlu0 0
    %415 = vperm.xlu0 %414, %v353
    %v416 = vpop.permute.xlu0 %415
    %419 = vset.pattern.permute.xlu0 0
    %420 = vperm.xlu0 %419, %v354
    %v421 = vpop.permute.xlu0 %420
    %424 = vset.pattern.permute.xlu0 0
    %425 = vperm.xlu0 %424, %v355
    %v426 = vpop.permute.xlu0 %425
    %429 = vset.pattern.permute.xlu0 0
    %430 = vperm.xlu0 %429, %v356
    %v431 = vpop.permute.xlu0 %430
    %434 = vset.pattern.permute.xlu0 0
    %435 = vperm.xlu0 %434, %v357
    %v436 = vpop.permute.xlu0 %435
    %v438 = vmul.f32 %v326, %v361
    %v439 = vmul.f32 %v327, %v366
    %v440 = vmul.f32 %v328, %v371
    %v441 = vmul.f32 %v329, %v376
    %v442 = vmul.f32 %v330, %v381
    %v443 = vmul.f32 %v331, %v386
    %v444 = vmul.f32 %v332, %v391
    %v445 = vmul.f32 %v333, %v396
    %v446 = vmul.f32 %v334, %v401
    %v447 = vmul.f32 %v335, %v406
    %v448 = vmul.f32 %v336, %v411
    %v449 = vmul.f32 %v337, %v416
    %v450 = vmul.f32 %v338, %v421
    %v451 = vmul.f32 %v339, %v426
    %v452 = vmul.f32 %v340, %v431
    %v453 = vmul.f32 %v341, %v436
    %v454 = vld [vmem:[%s5] sm:$0xff]
    %v455 = vld [vmem:[%s5 + $0x8] sm:$0xff]
    %v456 = vld [vmem:[%s5 + $0x10] sm:$0xff]
    %v457 = vld [vmem:[%s5 + $0x18] sm:$0xff]
    %v458 = vld [vmem:[%s5 + $0x20] sm:$0xff]
    %v459 = vld [vmem:[%s5 + $0x28] sm:$0xff]
    %v460 = vld [vmem:[%s5 + $0x30] sm:$0xff]
    %v461 = vld [vmem:[%s5 + $0x38] sm:$0xff]
    %v462 = vld [vmem:[%s5 + $0x40] sm:$0xff]
    %v463 = vld [vmem:[%s5 + $0x48] sm:$0xff]
    %v464 = vld [vmem:[%s5 + $0x50] sm:$0xff]
    %v465 = vld [vmem:[%s5 + $0x58] sm:$0xff]
    %v466 = vld [vmem:[%s5 + $0x60] sm:$0xff]
    %v467 = vld [vmem:[%s5 + $0x68] sm:$0xff]
    %v468 = vld [vmem:[%s5 + $0x70] sm:$0xff]
    %v469 = vld [vmem:[%s5 + $0x78] sm:$0xff]
    %v470 = vld [vmem:[%s2] sm:$0xf]
    %v471 = vld [vmem:[%s2 + $0x4] sm:$0xf]
    %v472 = vld [vmem:[%s2 + $0x8] sm:$0xf]
    %v473 = vld [vmem:[%s2 + $0xc] sm:$0xf]
    %v474 = vld [vmem:[%s2 + $0x10] sm:$0xf]
    %v475 = vld [vmem:[%s2 + $0x14] sm:$0xf]
    %v476 = vld [vmem:[%s2 + $0x18] sm:$0xf]
    %v477 = vld [vmem:[%s2 + $0x1c] sm:$0xf]
    %v478 = vld [vmem:[%s2 + $0x20] sm:$0xf]
    %v479 = vld [vmem:[%s2 + $0x24] sm:$0xf]
    %v480 = vld [vmem:[%s2 + $0x28] sm:$0xf]
    %v481 = vld [vmem:[%s2 + $0x2c] sm:$0xf]
    %v482 = vld [vmem:[%s2 + $0x30] sm:$0xf]
    %v483 = vld [vmem:[%s2 + $0x34] sm:$0xf]
    %v484 = vld [vmem:[%s2 + $0x38] sm:$0xf]
    %v485 = vld [vmem:[%s2 + $0x3c] sm:$0xf]
    %v486 = vunpack.c.l.bf16 %v470
    %v487 = vunpack.c.l.bf16 %v471
    %v488 = vunpack.c.l.bf16 %v472
    %v489 = vunpack.c.l.bf16 %v473
    %v490 = vunpack.c.l.bf16 %v474
    %v491 = vunpack.c.l.bf16 %v475
    %v492 = vunpack.c.l.bf16 %v476
    %v493 = vunpack.c.l.bf16 %v477
    %v494 = vunpack.c.l.bf16 %v478
    %v495 = vunpack.c.l.bf16 %v479
    %v496 = vunpack.c.l.bf16 %v480
    %v497 = vunpack.c.l.bf16 %v481
    %v498 = vunpack.c.l.bf16 %v482
    %v499 = vunpack.c.l.bf16 %v483
    %v500 = vunpack.c.l.bf16 %v484
    %v501 = vunpack.c.l.bf16 %v485
    %v502 = vld [vmem:[%s6] sm:$0xff]
    %v503 = vld [vmem:[%s6 + $0x8] sm:$0xff]
    %v504 = vld [vmem:[%s6 + $0x10] sm:$0xff]
    %v505 = vld [vmem:[%s6 + $0x18] sm:$0xff]
    %v506 = vld [vmem:[%s6 + $0x20] sm:$0xff]
    %v507 = vld [vmem:[%s6 + $0x28] sm:$0xff]
    %v508 = vld [vmem:[%s6 + $0x30] sm:$0xff]
    %v509 = vld [vmem:[%s6 + $0x38] sm:$0xff]
    %v510 = vld [vmem:[%s6 + $0x40] sm:$0xff]
    %v511 = vld [vmem:[%s6 + $0x48] sm:$0xff]
    %v512 = vld [vmem:[%s6 + $0x50] sm:$0xff]
    %v513 = vld [vmem:[%s6 + $0x58] sm:$0xff]
    %v514 = vld [vmem:[%s6 + $0x60] sm:$0xff]
    %v515 = vld [vmem:[%s6 + $0x68] sm:$0xff]
    %v516 = vld [vmem:[%s6 + $0x70] sm:$0xff]
    %v517 = vld [vmem:[%s6 + $0x78] sm:$0xff]
    %518 = vmatprep.subr.mxu0 0.0
    %519 = vmatpush1.msra.mxu0 %v502
    %520 = vmatprep.subr.mxu0 0.0
    %521 = vmatpush1.msra.mxu0 %v503
    %522 = vmatprep.subr.mxu0 0.0
    %523 = vmatpush1.msra.mxu0 %v504
    %524 = vmatprep.subr.mxu0 0.0
    %525 = vmatpush1.msra.mxu0 %v505
    %526 = vmatprep.subr.mxu0 0.0
    %527 = vmatpush1.msra.mxu0 %v506
    %528 = vmatprep.subr.mxu0 0.0
    %529 = vmatpush1.msra.mxu0 %v507
    %530 = vmatprep.subr.mxu0 0.0
    %531 = vmatpush1.msra.mxu0 %v508
    %532 = vmatprep.subr.mxu0 0.0
    %533 = vmatpush1.msra.mxu0 %v509
    %534 = vmatprep.subr.mxu0 0.0
    %535 = vmatpush1.msra.mxu0 %v510
    %536 = vmatprep.subr.mxu0 0.0
    %537 = vmatpush1.msra.mxu0 %v511
    %538 = vmatprep.subr.mxu0 0.0
    %539 = vmatpush1.msra.mxu0 %v512
    %540 = vmatprep.subr.mxu0 0.0
    %541 = vmatpush1.msra.mxu0 %v513
    %542 = vmatprep.subr.mxu0 0.0
    %543 = vmatpush1.msra.mxu0 %v514
    %544 = vmatprep.subr.mxu0 0.0
    %545 = vmatpush1.msra.mxu0 %v515
    %546 = vmatprep.subr.mxu0 0.0
    %547 = vmatpush1.msra.mxu0 %v516
    %548 = vmatprep.subr.mxu0 0.0
    %549 = vmatpush1.msra.mxu0 %v517
    %550 = vmatprep.subr.mxu0 0.0
    %551 = vmatpush1.msra.mxu0 0.0
    %552 = vmatprep.subr.mxu0 0.0
    %553 = vmatpush1.msra.mxu0 0.0
    %554 = vmatprep.subr.mxu0 0.0
    %555 = vmatpush1.msra.mxu0 0.0
    %556 = vmatprep.subr.mxu0 0.0
    %557 = vmatpush1.msra.mxu0 0.0
    %558 = vmatprep.subr.mxu0 0.0
    %559 = vmatpush1.msra.mxu0 0.0
    %560 = vmatprep.subr.mxu0 0.0
    %561 = vmatpush1.msra.mxu0 0.0
    %562 = vmatprep.subr.mxu0 0.0
    %563 = vmatpush1.msra.mxu0 0.0
    %564 = vmatprep.subr.mxu0 0.0
    %565 = vmatpush1.msra.mxu0 0.0
    %566 = vmatprep.subr.mxu0 0.0
    %567 = vmatpush1.msra.mxu0 0.0
    %568 = vmatprep.subr.mxu0 0.0
    %569 = vmatpush1.msra.mxu0 0.0
    %570 = vmatprep.subr.mxu0 0.0
    %571 = vmatpush1.msra.mxu0 0.0
    %572 = vmatprep.subr.mxu0 0.0
    %573 = vmatpush1.msra.mxu0 0.0
    %574 = vmatprep.subr.mxu0 0.0
    %575 = vmatpush1.msra.mxu0 0.0
    %576 = vmatprep.subr.mxu0 0.0
    %577 = vmatpush1.msra.mxu0 0.0
    %578 = vmatprep.subr.mxu0 0.0
    %579 = vmatpush1.msra.mxu0 0.0
    %580 = vmatprep.subr.mxu0 0.0
    %581 = vmatpush1.msra.mxu0 0.0
    %582 = vmatprep.mubr.f32.mxu0 0.0
    %583 = vmatmul.mubr.f32.gmra.mrb[0].mxu0 %v486
    %v584 = vpop.f32.mrb[0].mxu0
    %v585 = vadd.f32 0.0, %v584
    %v586 = vpop.f32.mrb[0].mxu0
    %587 = vmatprep.mubr.f32.mxu0 0.0
    %588 = vmatmul.mubr.f32.gmra.mrb[0].mxu0 %v487
    %v589 = vpop.f32.mrb[0].mxu0
    %v590 = vadd.f32 0.0, %v589
    %v591 = vpop.f32.mrb[0].mxu0
    %592 = vmatprep.mubr.f32.mxu0 0.0
    %593 = vmatmul.mubr.f32.gmra.mrb[0].mxu0 %v488
    %v594 = vpop.f32.mrb[0].mxu0
    %v595 = vadd.f32 0.0, %v594
    %v596 = vpop.f32.mrb[0].mxu0
    %597 = vmatprep.mubr.f32.mxu0 0.0
    %598 = vmatmul.mubr.f32.gmra.mrb[0].mxu0 %v489
    %v599 = vpop.f32.mrb[0].mxu0
    %v600 = vadd.f32 0.0, %v599
    %v601 = vpop.f32.mrb[0].mxu0
    %602 = vmatprep.mubr.f32.mxu0 0.0
    %603 = vmatmul.mubr.f32.gmra.mrb[0].mxu0 %v490
    %v604 = vpop.f32.mrb[0].mxu0
    %v605 = vadd.f32 0.0, %v604
    %v606 = vpop.f32.mrb[0].mxu0
    %607 = vmatprep.mubr.f32.mxu0 0.0
    %608 = vmatmul.mubr.f32.gmra.mrb[0].mxu0 %v491
    %v609 = vpop.f32.mrb[0].mxu0
    %v610 = vadd.f32 0.0, %v609
    %v611 = vpop.f32.mrb[0].mxu0
    %612 = vmatprep.mubr.f32.mxu0 0.0
    %613 = vmatmul.mubr.f32.gmra.mrb[0].mxu0 %v492
    %v614 = vpop.f32.mrb[0].mxu0
    %v615 = vadd.f32 0.0, %v614
    %v616 = vpop.f32.mrb[0].mxu0
    %617 = vmatprep.mubr.f32.mxu0 0.0
    %618 = vmatmul.mubr.f32.gmra.mrb[0].mxu0 %v493
    %v619 = vpop.f32.mrb[0].mxu0
    %v620 = vadd.f32 0.0, %v619
    %v621 = vpop.f32.mrb[0].mxu0
    %622 = vmatprep.mubr.f32.mxu0 0.0
    %623 = vmatmul.mubr.f32.gmra.mrb[0].mxu0 %v494
    %v624 = vpop.f32.mrb[0].mxu0
    %v625 = vadd.f32 0.0, %v624
    %v626 = vpop.f32.mrb[0].mxu0
    %627 = vmatprep.mubr.f32.mxu0 0.0
    %628 = vmatmul.mubr.f32.gmra.mrb[0].mxu0 %v495
    %v629 = vpop.f32.mrb[0].mxu0
    %v630 = vadd.f32 0.0, %v629
    %v631 = vpop.f32.mrb[0].mxu0
    %632 = vmatprep.mubr.f32.mxu0 0.0
    %633 = vmatmul.mubr.f32.gmra.mrb[0].mxu0 %v496
    %v634 = vpop.f32.mrb[0].mxu0
    %v635 = vadd.f32 0.0, %v634
    %v636 = vpop.f32.mrb[0].mxu0
    %637 = vmatprep.mubr.f32.mxu0 0.0
    %638 = vmatmul.mubr.f32.gmra.mrb[0].mxu0 %v497
    %v639 = vpop.f32.mrb[0].mxu0
    %v640 = vadd.f32 0.0, %v639
    %v641 = vpop.f32.mrb[0].mxu0
    %642 = vmatprep.mubr.f32.mxu0 0.0
    %643 = vmatmul.mubr.f32.gmra.mrb[0].mxu0 %v498
    %v644 = vpop.f32.mrb[0].mxu0
    %v645 = vadd.f32 0.0, %v644
    %v646 = vpop.f32.mrb[0].mxu0
    %647 = vmatprep.mubr.f32.mxu0 0.0
    %648 = vmatmul.mubr.f32.gmra.mrb[0].mxu0 %v499
    %v649 = vpop.f32.mrb[0].mxu0
    %v650 = vadd.f32 0.0, %v649
    %v651 = vpop.f32.mrb[0].mxu0
    %652 = vmatprep.mubr.f32.mxu0 0.0
    %653 = vmatmul.mubr.f32.gmra.mrb[0].mxu0 %v500
    %v654 = vpop.f32.mrb[0].mxu0
    %v655 = vadd.f32 0.0, %v654
    %v656 = vpop.f32.mrb[0].mxu0
    %657 = vmatprep.mubr.f32.mxu0 0.0
    %658 = vmatmul.mubr.f32.gmra.mrb[0].mxu0 %v501
    %v659 = vpop.f32.mrb[0].mxu0
    %v660 = vadd.f32 0.0, %v659
    %v661 = vpop.f32.mrb[0].mxu0
    %662 = vdwg.mxu0
    %663 = vmatprep.subr.mxu0 0.0
    %664 = vmatpush1.msra.mxu0 %v454
    %665 = vmatprep.subr.mxu0 0.0
    %666 = vmatpush1.msra.mxu0 %v455
    %667 = vmatprep.subr.mxu0 0.0
    %668 = vmatpush1.msra.mxu0 %v456
    %669 = vmatprep.subr.mxu0 0.0
    %670 = vmatpush1.msra.mxu0 %v457
    %671 = vmatprep.subr.mxu0 0.0
    %672 = vmatpush1.msra.mxu0 %v458
    %673 = vmatprep.subr.mxu0 0.0
    %674 = vmatpush1.msra.mxu0 %v459
    %675 = vmatprep.subr.mxu0 0.0
    %676 = vmatpush1.msra.mxu0 %v460
    %677 = vmatprep.subr.mxu0 0.0
    %678 = vmatpush1.msra.mxu0 %v461
    %679 = vmatprep.subr.mxu0 0.0
    %680 = vmatpush1.msra.mxu0 %v462
    %681 = vmatprep.subr.mxu0 0.0
    %682 = vmatpush1.msra.mxu0 %v463
    %683 = vmatprep.subr.mxu0 0.0
    %684 = vmatpush1.msra.mxu0 %v464
    %685 = vmatprep.subr.mxu0 0.0
    %686 = vmatpush1.msra.mxu0 %v465
    %687 = vmatprep.subr.mxu0 0.0
    %688 = vmatpush1.msra.mxu0 %v466
    %689 = vmatprep.subr.mxu0 0.0
    %690 = vmatpush1.msra.mxu0 %v467
    %691 = vmatprep.subr.mxu0 0.0
    %692 = vmatpush1.msra.mxu0 %v468
    %693 = vmatprep.subr.mxu0 0.0
    %694 = vmatpush1.msra.mxu0 %v469
    %695 = vmatprep.subr.mxu0 0.0
    %696 = vmatpush1.msra.mxu0 0.0
    %697 = vmatprep.subr.mxu0 0.0
    %698 = vmatpush1.msra.mxu0 0.0
    %699 = vmatprep.subr.mxu0 0.0
    %700 = vmatpush1.msra.mxu0 0.0
    %701 = vmatprep.subr.mxu0 0.0
    %702 = vmatpush1.msra.mxu0 0.0
    %703 = vmatprep.subr.mxu0 0.0
    %704 = vmatpush1.msra.mxu0 0.0
    %705 = vmatprep.subr.mxu0 0.0
    %706 = vmatpush1.msra.mxu0 0.0
    %707 = vmatprep.subr.mxu0 0.0
    %708 = vmatpush1.msra.mxu0 0.0
    %709 = vmatprep.subr.mxu0 0.0
    %710 = vmatpush1.msra.mxu0 0.0
    %711 = vmatprep.subr.mxu0 0.0
    %712 = vmatpush1.msra.mxu0 0.0
    %713 = vmatprep.subr.mxu0 0.0
    %714 = vmatpush1.msra.mxu0 0.0
    %715 = vmatprep.subr.mxu0 0.0
    %716 = vmatpush1.msra.mxu0 0.0
    %717 = vmatprep.subr.mxu0 0.0
    %718 = vmatpush1.msra.mxu0 0.0
    %719 = vmatprep.subr.mxu0 0.0
    %720 = vmatpush1.msra.mxu0 0.0
    %721 = vmatprep.subr.mxu0 0.0
    %722 = vmatpush1.msra.mxu0 0.0
    %723 = vmatprep.subr.mxu0 0.0
    %724 = vmatpush1.msra.mxu0 0.0
    %725 = vmatprep.subr.mxu0 0.0
    %726 = vmatpush1.msra.mxu0 0.0
    %727 = vmatprep.mubr.f32.mxu0 0.0
    %728 = vmatmul.mubr.f32.gmra.mrb[0].mxu0 %v438
    %v729 = vpop.f32.mrb[0].mxu0
    %v730 = vadd.f32 %v585, %v729
    %v731 = vpop.f32.mrb[0].mxu0
    %732 = vmatprep.mubr.f32.mxu0 0.0
    %733 = vmatmul.mubr.f32.gmra.mrb[0].mxu0 %v439
    %v734 = vpop.f32.mrb[0].mxu0
    %v735 = vadd.f32 %v590, %v734
    %v736 = vpop.f32.mrb[0].mxu0
    %737 = vmatprep.mubr.f32.mxu0 0.0
    %738 = vmatmul.mubr.f32.gmra.mrb[0].mxu0 %v440
    %v739 = vpop.f32.mrb[0].mxu0
    %v740 = vadd.f32 %v595, %v739
    %v741 = vpop.f32.mrb[0].mxu0
    %742 = vmatprep.mubr.f32.mxu0 0.0
    %743 = vmatmul.mubr.f32.gmra.mrb[0].mxu0 %v441
    %v744 = vpop.f32.mrb[0].mxu0
    %v745 = vadd.f32 %v600, %v744
    %v746 = vpop.f32.mrb[0].mxu0
    %747 = vmatprep.mubr.f32.mxu0 0.0
    %748 = vmatmul.mubr.f32.gmra.mrb[0].mxu0 %v442
    %v749 = vpop.f32.mrb[0].mxu0
    %v750 = vadd.f32 %v605, %v749
    %v751 = vpop.f32.mrb[0].mxu0
    %752 = vmatprep.mubr.f32.mxu0 0.0
    %753 = vmatmul.mubr.f32.gmra.mrb[0].mxu0 %v443
    %v754 = vpop.f32.mrb[0].mxu0
    %v755 = vadd.f32 %v610, %v754
    %v756 = vpop.f32.mrb[0].mxu0
    %757 = vmatprep.mubr.f32.mxu0 0.0
    %758 = vmatmul.mubr.f32.gmra.mrb[0].mxu0 %v444
    %v759 = vpop.f32.mrb[0].mxu0
    %v760 = vadd.f32 %v615, %v759
    %v761 = vpop.f32.mrb[0].mxu0
    %762 = vmatprep.mubr.f32.mxu0 0.0
    %763 = vmatmul.mubr.f32.gmra.mrb[0].mxu0 %v445
    %v764 = vpop.f32.mrb[0].mxu0
    %v765 = vadd.f32 %v620, %v764
    %v766 = vpop.f32.mrb[0].mxu0
    %767 = vmatprep.mubr.f32.mxu0 0.0
    %768 = vmatmul.mubr.f32.gmra.mrb[0].mxu0 %v446
    %v769 = vpop.f32.mrb[0].mxu0
    %v770 = vadd.f32 %v625, %v769
    %v771 = vpop.f32.mrb[0].mxu0
    %772 = vmatprep.mubr.f32.mxu0 0.0
    %773 = vmatmul.mubr.f32.gmra.mrb[0].mxu0 %v447
    %v774 = vpop.f32.mrb[0].mxu0
    %v775 = vadd.f32 %v630, %v774
    %v776 = vpop.f32.mrb[0].mxu0
    %777 = vmatprep.mubr.f32.mxu0 0.0
    %778 = vmatmul.mubr.f32.gmra.mrb[0].mxu0 %v448
    %v779 = vpop.f32.mrb[0].mxu0
    %v780 = vadd.f32 %v635, %v779
    %v781 = vpop.f32.mrb[0].mxu0
    %782 = vmatprep.mubr.f32.mxu0 0.0
    %783 = vmatmul.mubr.f32.gmra.mrb[0].mxu0 %v449
    %v784 = vpop.f32.mrb[0].mxu0
    %v785 = vadd.f32 %v640, %v784
    %v786 = vpop.f32.mrb[0].mxu0
    %787 = vmatprep.mubr.f32.mxu0 0.0
    %788 = vmatmul.mubr.f32.gmra.mrb[0].mxu0 %v450
    %v789 = vpop.f32.mrb[0].mxu0
    %v790 = vadd.f32 %v645, %v789
    %v791 = vpop.f32.mrb[0].mxu0
    %792 = vmatprep.mubr.f32.mxu0 0.0
    %793 = vmatmul.mubr.f32.gmra.mrb[0].mxu0 %v451
    %v794 = vpop.f32.mrb[0].mxu0
    %v795 = vadd.f32 %v650, %v794
    %v796 = vpop.f32.mrb[0].mxu0
    %797 = vmatprep.mubr.f32.mxu0 0.0
    %798 = vmatmul.mubr.f32.gmra.mrb[0].mxu0 %v452
    %v799 = vpop.f32.mrb[0].mxu0
    %v800 = vadd.f32 %v655, %v799
    %v801 = vpop.f32.mrb[0].mxu0
    %802 = vmatprep.mubr.f32.mxu0 0.0
    %803 = vmatmul.mubr.f32.gmra.mrb[0].mxu0 %v453
    %v804 = vpop.f32.mrb[0].mxu0
    %v805 = vadd.f32 %v660, %v804
    %v806 = vpop.f32.mrb[0].mxu0
    %807 = vdwg.mxu0
    %v808 = vld [vmem:[%s7] sm:$0x1]
    %v810 = vlaneseq
    %v811 = vshrl.u32 %v810, 7
    %v812 = vsub.s32 0, %v811
    %v813 = vrot.slane %v808, %v812
    %v815 = vadd.f32 %v730, %v813
    %v816 = vadd.f32 %v735, %v813
    %v817 = vadd.f32 %v740, %v813
    %v818 = vadd.f32 %v745, %v813
    %v819 = vadd.f32 %v750, %v813
    %v820 = vadd.f32 %v755, %v813
    %v821 = vadd.f32 %v760, %v813
    %v822 = vadd.f32 %v765, %v813
    %v823 = vadd.f32 %v770, %v813
    %v824 = vadd.f32 %v775, %v813
    %v825 = vadd.f32 %v780, %v813
    %v826 = vadd.f32 %v785, %v813
    %v827 = vadd.f32 %v790, %v813
    %v828 = vadd.f32 %v795, %v813
    %v829 = vadd.f32 %v800, %v813
    %v830 = vadd.f32 %v805, %v813
    %v831 = vld [vmem:[%s4] sm:$0x3]
    %832 = vmatprep.subr.mxu0 0.0
    %833 = vmatpush1.msra.mxu0 %v815
    %834 = vmatprep.subr.mxu0 0.0
    %835 = vmatpush1.msra.mxu0 %v816
    %836 = vmatprep.subr.mxu0 0.0
    %837 = vmatpush1.msra.mxu0 %v817
    %838 = vmatprep.subr.mxu0 0.0
    %839 = vmatpush1.msra.mxu0 %v818
    %840 = vmatprep.subr.mxu0 0.0
    %841 = vmatpush1.msra.mxu0 %v819
    %842 = vmatprep.subr.mxu0 0.0
    %843 = vmatpush1.msra.mxu0 %v820
    %844 = vmatprep.subr.mxu0 0.0
    %845 = vmatpush1.msra.mxu0 %v821
    %846 = vmatprep.subr.mxu0 0.0
    %847 = vmatpush1.msra.mxu0 %v822
    %848 = vmatprep.subr.mxu0 0.0
    %849 = vmatpush1.msra.mxu0 %v823
    %850 = vmatprep.subr.mxu0 0.0
    %851 = vmatpush1.msra.mxu0 %v824
    %852 = vmatprep.subr.mxu0 0.0
    %853 = vmatpush1.msra.mxu0 %v825
    %854 = vmatprep.subr.mxu0 0.0
    %855 = vmatpush1.msra.mxu0 %v826
    %856 = vmatprep.subr.mxu0 0.0
    %857 = vmatpush1.msra.mxu0 %v827
    %858 = vmatprep.subr.mxu0 0.0
    %859 = vmatpush1.msra.mxu0 %v828
    %860 = vmatprep.subr.mxu0 0.0
    %861 = vmatpush1.msra.mxu0 %v829
    %862 = vmatprep.subr.mxu0 0.0
    %863 = vmatpush1.msra.mxu0 %v830
    %864 = vmatprep.subr.mxu0 0.0
    %865 = vmatpush1.msra.mxu0 0.0
    %866 = vmatprep.subr.mxu0 0.0
    %867 = vmatpush1.msra.mxu0 0.0
    %868 = vmatprep.subr.mxu0 0.0
    %869 = vmatpush1.msra.mxu0 0.0
    %870 = vmatprep.subr.mxu0 0.0
    %871 = vmatpush1.msra.mxu0 0.0
    %872 = vmatprep.subr.mxu0 0.0
    %873 = vmatpush1.msra.mxu0 0.0
    %874 = vmatprep.subr.mxu0 0.0
    %875 = vmatpush1.msra.mxu0 0.0
    %876 = vmatprep.subr.mxu0 0.0
    %877 = vmatpush1.msra.mxu0 0.0
    %878 = vmatprep.subr.mxu0 0.0
    %879 = vmatpush1.msra.mxu0 0.0
    %880 = vmatprep.subr.mxu0 0.0
    %881 = vmatpush1.msra.mxu0 0.0
    %882 = vmatprep.subr.mxu0 0.0
    %883 = vmatpush1.msra.mxu0 0.0
    %884 = vmatprep.subr.mxu0 0.0
    %885 = vmatpush1.msra.mxu0 0.0
    %886 = vmatprep.subr.mxu0 0.0
    %887 = vmatpush1.msra.mxu0 0.0
    %888 = vmatprep.subr.mxu0 0.0
    %889 = vmatpush1.msra.mxu0 0.0
    %890 = vmatprep.subr.mxu0 0.0
    %891 = vmatpush1.msra.mxu0 0.0
    %892 = vmatprep.subr.mxu0 0.0
    %893 = vmatpush1.msra.mxu0 0.0
    %894 = vmatprep.subr.mxu0 0.0
    %895 = vmatpush1.msra.mxu0 0.0
    %896 = vmatprep.mubr.f32.mxu0 0.0
    %897 = vmatmul.mubr.f32.gmra.mrb[0].mxu0 %v831
    %v898 = vpop.f32.mrb[0].mxu0
    %v899 = vadd.f32 0.0, %v898
    %v900 = vpop.f32.mrb[0].mxu0
    %901 = vdwg.mxu0
    %902 = vst [vmem:[%s8] sm:$0x3] %v899
  $region41: #{graphsage_forward.3} parent=0 // pred_fallthru
    _
  // Predicated region
  $region42: #{graphsage_forward.3} parent=0 // pred_check
    _
  $region43: #{graphsage_forward.3} parent=0 // pred_check_branch
    %904 = sbr.rel (0) target = $region45
  $region44: #{graphsage_forward.3} parent=0 // pred_region
    _
  $region45: #{graphsage_forward.3} parent=0 // pred_fallthru
    _
  // Predicated region
  $region46: #{graphsage_forward.3} parent=0 // pred_check
    _
  $region47: #{graphsage_forward.3} parent=0 // pred_check_branch
    %906 = sbr.rel (0) target = $region49
  $region48: #{graphsage_forward.3} parent=0 // pred_region
    _
  $region49: #{graphsage_forward.3} parent=0 // pred_fallthru
    _

</llo_original>
